<compile_context>
chip_gen: v7x
topology: tpu7x:2x2x1
jax: 0.10.0
libtpu: 0.0.40
codegen_flags: <defaults>
</compile_context>

<pallas_src>
import numpy as np
import jax
import jax.numpy as jnp
from jax.experimental import pallas as pl
from jax.experimental.pallas import tpu as pltpu


def _make_bins(dim: int) -> jnp.ndarray:
    """Deterministic bin centers, identical to the PyTorch __init__."""
    edges = np.array([-3.0 / dim] + list(np.linspace(0.0, 1.0, dim - 1)) + [1.0 + 3.0 / dim])
    centers = (edges[1:] + edges[:-1]) / 2.0
    return jnp.asarray(centers, dtype=jnp.float32)  # shape (dim,)


def _round_up(x: int, m: int) -> int:
    return ((x + m - 1) // m) * m


def _std_uncert_kernel(probs_ref, bins_ref, out_ref):
    # probs_ref: (TILE_N, D) f32, bins_ref: (1, D) f32, out_ref: (TILE_N, 1) f32
    p = probs_ref[...]                                     # (TILE_N, D)
    b = bins_ref[...]                                      # (1, D) -> broadcast over rows
    pb = p * b                                             # reuse product for both moments
    e_x = jnp.sum(pb, axis=1, keepdims=True)               # E[x]   -> (TILE_N, 1)
    e_x2 = jnp.sum(pb * b, axis=1, keepdims=True)          # E[x^2] -> (TILE_N, 1)
    var = jnp.maximum(e_x2 - e_x * e_x, 0.0)               # clamp f32 rounding negatives
    out_ref[...] = jnp.sqrt(var)                           # std    -> (TILE_N, 1)


def _compute_std_uncertainty_pallas(probs: jnp.ndarray,
                                    bins: jnp.ndarray,
                                    tile_n: int = 1024) -> jnp.ndarray:
    """probs: (N, D) f32, bins: (D,) f32 -> uncert: (N,) f32 via a row-tiled kernel."""
    n, d = probs.shape
    probs = probs.astype(jnp.float32)
    tile_n = min(tile_n, _round_up(n, 8))                  # keep sublane alignment
    n_pad = _round_up(n, tile_n)
    if n_pad != n:
        # Zero rows produce var = 0 -> std = 0; padded tail is sliced off below.
        probs = jnp.pad(probs, ((0, n_pad - n), (0, 0)))
    bins_2d = bins.reshape(1, d).astype(jnp.float32)

    grid = (n_pad // tile_n,)
    out = pl.pallas_call(
        _std_uncert_kernel,
        out_shape=jax.ShapeDtypeStruct((n_pad, 1), jnp.float32),
        grid=grid,
        in_specs=[
            pl.BlockSpec((tile_n, d), lambda i: (i, 0)),   # row-tiled probs stream
            pl.BlockSpec((1, d), lambda i: (0, 0)),        # bins stay resident (index fixed)
        ],
        out_specs=pl.BlockSpec((tile_n, 1), lambda i: (i, 0)),
        compiler_params=pltpu.CompilerParams(
            dimension_semantics=("parallel",),             # shard row grid across TCs (v7x)
        ),
    )(probs, bins_2d)
    return out[:n, 0]


# Below this row count the pallas_call launch overhead dominates; plain JAX is faster.
_PALLAS_MIN_ROWS = 256


def _compute_std_uncertainty(probs: jnp.ndarray, bins: jnp.ndarray) -> jnp.ndarray:
    n, _ = probs.shape
    if n < _PALLAS_MIN_ROWS:
        e_x = jnp.sum(probs * bins[None, :], axis=1)
        e_x2 = jnp.sum(probs * bins[None, :] ** 2, axis=1)
        return jnp.sqrt(jnp.maximum(e_x2 - e_x * e_x, 0.0))
    return _compute_std_uncertainty_pallas(probs, bins)


class PostprocessingPallas:
    """JAX/Pallas port of the PyTorch Postprocessing module."""

    def __init__(self, dim, return_probs=True, uncert="std", method="raw"):
        self.dim = dim
        self.return_probs = return_probs
        self.uncert = uncert
        self.method = method
        self.bins = _make_bins(dim)  # (dim,) f32, non-trainable

    def __call__(self, probs, preds, method=None):
        method = method or self.method
        if method != "raw":
            raise NotImplementedError(f"Unknown method: {method}")
        return self.forward_raw(probs, preds)

    def forward_raw(self, probs, preds):
        uncert = self._compute_uncertainty(probs)
        if self.return_probs:
            return (preds, uncert, probs)
        return (preds, uncert)

    def _compute_uncertainty(self, probs):
        if self.uncert == "std":
            return _compute_std_uncertainty(probs, self.bins)
        elif self.uncert == "entropy":
            # TODO(synk): entropy path not exercised by default config; plain-JAX fallback.
            return -jnp.sum(probs * jnp.log(probs + 1e-10), axis=1)
        else:
            raise NotImplementedError(f"Unknown uncertainty measure: {self.uncert}")


if __name__ == "__main__":
    key = jax.random.PRNGKey(0)

    def ref_std(probs, bins):
        e_x = jnp.sum(probs * bins[None, :], axis=1)
        e_x2 = jnp.sum(probs * bins[None, :] ** 2, axis=1)
        return jnp.sqrt(jnp.maximum(e_x2 - e_x * e_x, 0.0))

    n_bins = 32
    module = PostprocessingPallas(dim=n_bins, return_probs=True, uncert="std", method="raw")

    # Case 1: tiny input -> plain-JAX fast path.
    # Case 2: larger (still small) input, non-multiple of the tile -> Pallas row-tiled path
    #         with padding + multi-step grid.
    for n_samples in (8, 2050):
        key, k_probs, k_preds = jax.random.split(key, 3)
        logits = jax.random.normal(k_probs, (n_samples, n_bins), dtype=jnp.float32)
        probs = jax.nn.softmax(logits, axis=-1)                                # (N, D)
        preds = jax.random.uniform(k_preds, (n_samples,), dtype=jnp.float32)   # (N,)

        preds_out, uncert, probs_out = module(probs, preds)
        jax.block_until_ready((preds_out, uncert, probs_out))

        assert preds_out.shape == (n_samples,)
        assert uncert.shape == (n_samples,)
        assert probs_out.shape == (n_samples, n_bins)

        ref_uncert = ref_std(probs, module.bins)
        np.testing.assert_allclose(np.asarray(uncert), np.asarray(ref_uncert),
                                   rtol=1e-5, atol=1e-6)
        np.testing.assert_allclose(np.asarray(probs_out), np.asarray(probs),
                                   rtol=0, atol=0)
        np.testing.assert_allclose(np.asarray(preds_out), np.asarray(preds),
                                   rtol=0, atol=0)

    # Also exercise the Pallas kernel directly with a tile smaller than N (grid > 1,
    # ragged tail) to make sure tiling + padding are correct on their own.
    key, k_probs = jax.random.split(key)
    probs_big = jax.nn.softmax(
        jax.random.normal(k_probs, (1300, n_bins), dtype=jnp.float32), axis=-1)
    uncert_big = _compute_std_uncertainty_pallas(probs_big, module.bins, tile_n=512)
    jax.block_until_ready(uncert_big)
    np.testing.assert_allclose(np.asarray(uncert_big),
                               np.asarray(ref_std(probs_big, module.bins)),
                               rtol=1e-5, atol=1e-6)

    print("KERNEL_OK")
</pallas_src>

<mosaic_0001>
module attributes {stable_mosaic.version = 11 : i64} {
  func.func @_std_uncert_kernel(%arg0: i32, %arg1: memref<1024x32xf32, #tpu.memory_space<vmem>>, %arg2: memref<1x32xf32, #tpu.memory_space<vmem>>, %arg3: memref<1024x1xf32, #tpu.memory_space<vmem>>) attributes {dimension_semantics = [#tpu.dimension_semantics<parallel>], iteration_bounds = array<i64: 3>, scalar_prefetch = 0 : i64, scratch_operands = 0 : i64, tpu.core_type = #tpu.core_type<tc>, window_params = [{transform_indices = @transform_0, window_bounds = array<i64: 1024, 32>}, {pipeline_mode = #tpu.pipeline_mode<synchronous>, transform_indices = @transform_1, window_bounds = array<i64: 1, 32>}, {transform_indices = @transform_2, window_bounds = array<i64: 1024, 1>}]} {
    %c0 = arith.constant 0 : index
    %c0_0 = arith.constant 0 : index
    %0 = vector.load %arg1[%c0, %c0_0] : memref<1024x32xf32, #tpu.memory_space<vmem>>, vector<1024x32xf32>
    %c0_1 = arith.constant 0 : index
    %c0_2 = arith.constant 0 : index
    %1 = vector.load %arg2[%c0_1, %c0_2] : memref<1x32xf32, #tpu.memory_space<vmem>>, vector<1x32xf32>
    %2 = vector.broadcast %1 : vector<1x32xf32> to vector<1024x32xf32>
    %3 = arith.mulf %0, %2 : vector<1024x32xf32>
    %cst = arith.constant dense<0.000000e+00> : vector<1024xf32>
    %4 = vector.multi_reduction <add>, %3, %cst [1] : vector<1024x32xf32> to vector<1024xf32>
    %5 = vector.shape_cast %4 : vector<1024xf32> to vector<1024x1xf32>
    %6 = vector.broadcast %1 : vector<1x32xf32> to vector<1024x32xf32>
    %7 = arith.mulf %3, %6 : vector<1024x32xf32>
    %cst_3 = arith.constant dense<0.000000e+00> : vector<1024xf32>
    %8 = vector.multi_reduction <add>, %7, %cst_3 [1] : vector<1024x32xf32> to vector<1024xf32>
    %9 = vector.shape_cast %8 : vector<1024xf32> to vector<1024x1xf32>
    %10 = arith.mulf %5, %5 : vector<1024x1xf32>
    %11 = arith.subf %9, %10 : vector<1024x1xf32>
    %cst_4 = arith.constant 0.000000e+00 : f32
    %12 = vector.broadcast %cst_4 : f32 to vector<1024x1xf32>
    %13 = arith.maximumf %11, %12 : vector<1024x1xf32>
    %14 = math.sqrt %13 : vector<1024x1xf32>
    %c0_5 = arith.constant 0 : index
    %c0_6 = arith.constant 0 : index
    %15 = vector.load %arg3[%c0_5, %c0_6] : memref<1024x1xf32, #tpu.memory_space<vmem>>, vector<1024x1xf32>
    tpu.vector_store %arg3[%c0_5, %c0_6], %14 {strides = array<i32>} : memref<1024x1xf32, #tpu.memory_space<vmem>>, vector<1024x1xf32>,
    return
  }
  func.func @transform_0(%arg0: i32) -> (i32, i32) {
    %c0_i32 = arith.constant 0 : i32
    %c0_i32_0 = arith.constant 0 : i32
    return %arg0, %c0_i32 : i32, i32
  }
  func.func @transform_1(%arg0: i32) -> (i32, i32) {
    %c0_i32 = arith.constant 0 : i32
    %c0_i32_0 = arith.constant 0 : i32
    %c0_i32_1 = arith.constant 0 : i32
    return %c0_i32, %c0_i32_0 : i32, i32
  }
  func.func @transform_2(%arg0: i32) -> (i32, i32) {
    %c0_i32 = arith.constant 0 : i32
    %c0_i32_0 = arith.constant 0 : i32
    return %arg0, %c0_i32 : i32, i32
  }
}

</mosaic_0001>

<llo_original>
// kernel: tpu_custom_call.1
$region0: #{tpu_custom_call.1}
  #allocation0 [shape = 'u32[]', space=smem, size = 0x4, offset = 0x4, fixed_abs, tag = 'smem constant byte address 0x4 - core index']
  #allocation1 [shape = 'u32[144,128]{1,0:T(1,128)}', space=vmem, size = 0x12000, scoped, tag = 'internal scratch']
  %s0 = inlined_call_operand.vmem [shape: f32[3072,32], index: 0, kind: input, shape index: {}]
  %s1 = inlined_call_operand.vmem [shape: f32[1,32], index: 1, kind: input, shape index: {}]
  %s2 = inlined_call_operand.vmem [shape: f32[3072,1], index: 2, kind: output, shape index: {}]
  %s3 = sld [smem:[#allocation0]]
  $region41: #{tpu_custom_call.1} parent=0
    _
  %s5 = ssub.s32 1, %s3
  %s6 = scalar_select 0, %s5, %s3
  loop: start=0, step=1, limit=5
  $region2: #{tpu_custom_call.1} parent=0 // loop_pre_header
    _
  $region3: #{tpu_custom_call.1} parent=0 // loop_header
    %s8 = sphi 0, %s12
    %p9 = scmp.ge.s32.totalorder %s8, 5
    %s18 = sphi 0, %s20
    %s21 = sphi 0, %s18
    %s22 = sphi 0, %s21
    %s38 = sphi 0, %s22
    %s42 = sphi 0, %s42
    %s44 = sphi 0, %s42
    %s45 = sphi 0, %s44
    %s59 = sphi 0, %s45
    %s65 = sphi 0, %s67
    %s68 = sphi 0, %s65
    %s69 = sphi 0, %s68
    %s85 = sphi 0, %s69
  $region4: #{tpu_custom_call.1} parent=0 // loop_header_branch
    %11 = sbr.rel (%p9) target = $region8
  $region5: #{tpu_custom_call.1} parent=0 // loop_body
    %s13 = ssub.s32 %s8, 1
    %s14 = ssub.s32 %s8, 2
    %s15 = sadd.s32 %s8, 1
    %s16 = ssub.s32 %s8, %s15
    %p17 = scmp.eq.s32.totalorder %s16, 0
    %s19 = sadd.s32 %s18, 1
    %s20 = scalar_select %p17, %s18, %s19
    %p23 = pneg %p17
    %p24 = scmp.eq.s32.totalorder %s8, 2
    %p25 = por %p23, %p24
    %p26 = scmp.ne.s32.totalorder %s18, %s21
    %p27 = scmp.eq.s32.totalorder %s8, 0
    %p28 = por %p26, %p27
    %p29 = scmp.ne.s32.totalorder %s18, %s21
    %p30 = scmp.eq.s32.totalorder %s13, 2
    %p31 = por %p29, %p30
    %p32 = scmp.ne.s32.totalorder %s21, %s22
    %p33 = scmp.eq.s32.totalorder %s13, 0
    %p34 = por %p32, %p33
    %p35 = scmp.ne.s32.totalorder %s21, %s22
    %p36 = scmp.eq.s32.totalorder %s14, 2
    %p37 = por %p35, %p36
    %p39 = scmp.ne.s32.totalorder %s22, %s38
    %p40 = scmp.eq.s32.totalorder %s14, 0
    %p41 = por %p39, %p40
    %s43 = sadd.s32 %s42, 1
    %p46 = scmp.eq.s32.totalorder %s8, 2
    %p47 = scmp.ne.s32.totalorder %s42, %s44
    %p48 = scmp.eq.s32.totalorder %s8, 0
    %p49 = por %p47, %p48
    %p50 = scmp.ne.s32.totalorder %s42, %s44
    %p51 = scmp.eq.s32.totalorder %s13, 2
    %p52 = por %p50, %p51
    %p53 = scmp.ne.s32.totalorder %s44, %s45
    %p54 = scmp.eq.s32.totalorder %s13, 0
    %p55 = por %p53, %p54
    %p56 = scmp.ne.s32.totalorder %s44, %s45
    %p57 = scmp.eq.s32.totalorder %s14, 2
    %p58 = por %p56, %p57
    %p60 = scmp.ne.s32.totalorder %s45, %s59
    %p61 = scmp.eq.s32.totalorder %s14, 0
    %p62 = por %p60, %p61
    %s63 = ssub.s32 %s8, %s15
    %p64 = scmp.eq.s32.totalorder %s63, 0
    %s66 = sadd.s32 %s65, 1
    %s67 = scalar_select %p64, %s65, %s66
    %p70 = pneg %p64
    %p71 = scmp.eq.s32.totalorder %s8, 2
    %p72 = por %p70, %p71
    %p73 = scmp.ne.s32.totalorder %s65, %s68
    %p74 = scmp.eq.s32.totalorder %s8, 0
    %p75 = por %p73, %p74
    %p76 = scmp.ne.s32.totalorder %s65, %s68
    %p77 = scmp.eq.s32.totalorder %s13, 2
    %p78 = por %p76, %p77
    %p79 = scmp.ne.s32.totalorder %s68, %s69
    %p80 = scmp.eq.s32.totalorder %s13, 0
    %p81 = por %p79, %p80
    %p82 = scmp.ne.s32.totalorder %s68, %s69
    %p83 = scmp.eq.s32.totalorder %s14, 2
    %p84 = por %p82, %p83
    %p86 = scmp.ne.s32.totalorder %s69, %s85
    %p87 = scmp.eq.s32.totalorder %s14, 0
    %p88 = por %p86, %p87
    %p89 = scmp.le.s32.totalorder 1, %s8
    %p90 = scmp.lt.s32.totalorder %s8, 4
    %p91 = pnand %p89, %p90
    %p92 = pneg %p91
    // Predicated region
    $region9: #{tpu_custom_call.1} parent=5 // pred_check
      _
    $region10: #{tpu_custom_call.1} parent=5 // pred_check_branch
      %94 = sbr.rel (%p91) target = $region12
    $region11: #{tpu_custom_call.1} parent=5 // pred_region
      %s95 = ssub.s32 %s8, 1
      // Predicated region
      $region13: #{tpu_custom_call.1} parent=11 // pred_check
        %p96 = pneg %p55
      $region14: #{tpu_custom_call.1} parent=11 // pred_check_branch
        %98 = sbr.rel (%p96) target = $region16
      $region15: #{tpu_custom_call.1} parent=11 // pred_region
        _
      $region16: #{tpu_custom_call.1} parent=11 // pred_fallthru
        _
    $region12: #{tpu_custom_call.1} parent=5 // pred_fallthru
      _
    %p99 = scmp.lt.s32.totalorder %s8, 3
    // Predicated region
    $region17: #{tpu_custom_call.1} parent=5 // pred_check
      %p100 = pneg %p99
    $region18: #{tpu_custom_call.1} parent=5 // pred_check_branch
      %102 = sbr.rel (%p100) target = $region20
    $region19: #{tpu_custom_call.1} parent=5 // pred_region
      // Predicated region
      $region21: #{tpu_custom_call.1} parent=19 // pred_check
        %p103 = pneg %p28
      $region22: #{tpu_custom_call.1} parent=19 // pred_check_branch
        %105 = sbr.rel (%p103) target = $region24
      $region23: #{tpu_custom_call.1} parent=19 // pred_region
        %s106 = smul.u32 128, %s8
        %p107 = scmp.lt.s32.totalorder %s106, 383
        %s108 = scalar_select %p107, %s106, 383
        %s109 = smul.addr %s108, 8
        %s110 = scalar_lea.vmem %s0, %s109
        %s111 = smul.u32 128, %s8
      $region24: #{tpu_custom_call.1} parent=19 // pred_fallthru
        _
    $region20: #{tpu_custom_call.1} parent=5 // pred_fallthru
      _
    %p112 = scmp.le.s32.totalorder 1, %s8
    %p113 = scmp.lt.s32.totalorder %s8, 4
    %p114 = pnand %p112, %p113
    %p115 = pneg %p114
    // Predicated region
    $region25: #{tpu_custom_call.1} parent=5 // pred_check
      _
    $region26: #{tpu_custom_call.1} parent=5 // pred_check_branch
      %117 = sbr.rel (%p114) target = $region28
    $region27: #{tpu_custom_call.1} parent=5 // pred_region
      %s118 = ssub.s32 %s8, 1
      %s119 = smul.u32 128, %s13
      %p120 = scmp.lt.s32.totalorder %s119, 383
      %s121 = scalar_select %p120, %s119, 383
      %s122 = smul.addr %s121, 8
      %s123 = scalar_lea.vmem %s0, %s122
      %p124 = pneg %p34
      %p125 = pneg %p31
      %p126 = pneg %p55
      %p127 = pneg %p52
      %p128 = pneg %p81
      %p129 = pneg %p78
      %s130 = smul.u32 128, %s13
      %p131 = scmp.lt.s32.totalorder %s130, 383
      %s132 = scalar_select %p131, %s130, 383
      %s133 = smul.addr %s132, 8
      %s134 = scalar_lea.vmem %s2, %s133
      %s135 = smul.u32 128, %s13
      %p136 = scmp.lt.s32.totalorder %s135, 383
      %s137 = scalar_select %p136, %s135, 383
      %s138 = smul.addr %s137, 8
      %s139 = scalar_lea.vmem %s0, %s138
      %s140 = smul.u32 128, %s13
      %s141 = smul.u32 128, %s13
      %p142 = scmp.lt.s32.totalorder %s141, 383
      %s143 = scalar_select %p142, %s141, 383
      %s144 = smul.addr %s143, 8
      %s145 = scalar_lea.vmem %s2, %s144
      %s146 = smul.u32 128, %s13
      %v147 = vld [vmem:[%s139] sm:$0xff]
      %v148 = vld [vmem:[%s139 + $0x8] sm:$0xff]
      %v149 = vld [vmem:[%s139 + $0x10] sm:$0xff]
      %v150 = vld [vmem:[%s139 + $0x18] sm:$0xff]
      %v151 = vld [vmem:[%s139 + $0x20] sm:$0xff]
      %v152 = vld [vmem:[%s139 + $0x28] sm:$0xff]
      %v153 = vld [vmem:[%s139 + $0x30] sm:$0xff]
      %v154 = vld [vmem:[%s139 + $0x38] sm:$0xff]
      %v155 = vld [vmem:[%s139 + $0x40] sm:$0xff]
      %v156 = vld [vmem:[%s139 + $0x48] sm:$0xff]
      %v157 = vld [vmem:[%s139 + $0x50] sm:$0xff]
      %v158 = vld [vmem:[%s139 + $0x58] sm:$0xff]
      %v159 = vld [vmem:[%s139 + $0x60] sm:$0xff]
      %v160 = vld [vmem:[%s139 + $0x68] sm:$0xff]
      %v161 = vld [vmem:[%s139 + $0x70] sm:$0xff]
      %v162 = vld [vmem:[%s139 + $0x78] sm:$0xff]
      %v163 = vld [vmem:[%s139 + $0x80] sm:$0xff]
      %v164 = vld [vmem:[%s139 + $0x88] sm:$0xff]
      %v165 = vld [vmem:[%s139 + $0x90] sm:$0xff]
      %v166 = vld [vmem:[%s139 + $0x98] sm:$0xff]
      %v167 = vld [vmem:[%s139 + $0xa0] sm:$0xff]
      %v168 = vld [vmem:[%s139 + $0xa8] sm:$0xff]
      %v169 = vld [vmem:[%s139 + $0xb0] sm:$0xff]
      %v170 = vld [vmem:[%s139 + $0xb8] sm:$0xff]
      %v171 = vld [vmem:[%s139 + $0xc0] sm:$0xff]
      %v172 = vld [vmem:[%s139 + $0xc8] sm:$0xff]
      %v173 = vld [vmem:[%s139 + $0xd0] sm:$0xff]
      %v174 = vld [vmem:[%s139 + $0xd8] sm:$0xff]
      %v175 = vld [vmem:[%s139 + $0xe0] sm:$0xff]
      %v176 = vld [vmem:[%s139 + $0xe8] sm:$0xff]
      %v177 = vld [vmem:[%s139 + $0xf0] sm:$0xff]
      %v178 = vld [vmem:[%s139 + $0xf8] sm:$0xff]
      %v179 = vld [vmem:[%s139 + $0x100] sm:$0xff]
      %v180 = vld [vmem:[%s139 + $0x108] sm:$0xff]
      %v181 = vld [vmem:[%s139 + $0x110] sm:$0xff]
      %v182 = vld [vmem:[%s139 + $0x118] sm:$0xff]
      %v183 = vld [vmem:[%s139 + $0x120] sm:$0xff]
      %v184 = vld [vmem:[%s139 + $0x128] sm:$0xff]
      %v185 = vld [vmem:[%s139 + $0x130] sm:$0xff]
      %v186 = vld [vmem:[%s139 + $0x138] sm:$0xff]
      %v187 = vld [vmem:[%s139 + $0x140] sm:$0xff]
      %v188 = vld [vmem:[%s139 + $0x148] sm:$0xff]
      %v189 = vld [vmem:[%s139 + $0x150] sm:$0xff]
      %v190 = vld [vmem:[%s139 + $0x158] sm:$0xff]
      %v191 = vld [vmem:[%s139 + $0x160] sm:$0xff]
      %v192 = vld [vmem:[%s139 + $0x168] sm:$0xff]
      %v193 = vld [vmem:[%s139 + $0x170] sm:$0xff]
      %v194 = vld [vmem:[%s139 + $0x178] sm:$0xff]
      %v195 = vld [vmem:[%s139 + $0x180] sm:$0xff]
      %v196 = vld [vmem:[%s139 + $0x188] sm:$0xff]
      %v197 = vld [vmem:[%s139 + $0x190] sm:$0xff]
      %v198 = vld [vmem:[%s139 + $0x198] sm:$0xff]
      %v199 = vld [vmem:[%s139 + $0x1a0] sm:$0xff]
      %v200 = vld [vmem:[%s139 + $0x1a8] sm:$0xff]
      %v201 = vld [vmem:[%s139 + $0x1b0] sm:$0xff]
      %v202 = vld [vmem:[%s139 + $0x1b8] sm:$0xff]
      %v203 = vld [vmem:[%s139 + $0x1c0] sm:$0xff]
      %v204 = vld [vmem:[%s139 + $0x1c8] sm:$0xff]
      %v205 = vld [vmem:[%s139 + $0x1d0] sm:$0xff]
      %v206 = vld [vmem:[%s139 + $0x1d8] sm:$0xff]
      %v207 = vld [vmem:[%s139 + $0x1e0] sm:$0xff]
      %v208 = vld [vmem:[%s139 + $0x1e8] sm:$0xff]
      %v209 = vld [vmem:[%s139 + $0x1f0] sm:$0xff]
      %v210 = vld [vmem:[%s139 + $0x1f8] sm:$0xff]
      %v211 = vld [vmem:[%s139 + $0x200] sm:$0xff]
      %v212 = vld [vmem:[%s139 + $0x208] sm:$0xff]
      %v213 = vld [vmem:[%s139 + $0x210] sm:$0xff]
      %v214 = vld [vmem:[%s139 + $0x218] sm:$0xff]
      %v215 = vld [vmem:[%s139 + $0x220] sm:$0xff]
      %v216 = vld [vmem:[%s139 + $0x228] sm:$0xff]
      %v217 = vld [vmem:[%s139 + $0x230] sm:$0xff]
      %v218 = vld [vmem:[%s139 + $0x238] sm:$0xff]
      %v219 = vld [vmem:[%s139 + $0x240] sm:$0xff]
      %v220 = vld [vmem:[%s139 + $0x248] sm:$0xff]
      %v221 = vld [vmem:[%s139 + $0x250] sm:$0xff]
      %v222 = vld [vmem:[%s139 + $0x258] sm:$0xff]
      %v223 = vld [vmem:[%s139 + $0x260] sm:$0xff]
      %v224 = vld [vmem:[%s139 + $0x268] sm:$0xff]
      %v225 = vld [vmem:[%s139 + $0x270] sm:$0xff]
      %v226 = vld [vmem:[%s139 + $0x278] sm:$0xff]
      %v227 = vld [vmem:[%s139 + $0x280] sm:$0xff]
      %v228 = vld [vmem:[%s139 + $0x288] sm:$0xff]
      %v229 = vld [vmem:[%s139 + $0x290] sm:$0xff]
      %v230 = vld [vmem:[%s139 + $0x298] sm:$0xff]
      %v231 = vld [vmem:[%s139 + $0x2a0] sm:$0xff]
      %v232 = vld [vmem:[%s139 + $0x2a8] sm:$0xff]
      %v233 = vld [vmem:[%s139 + $0x2b0] sm:$0xff]
      %v234 = vld [vmem:[%s139 + $0x2b8] sm:$0xff]
      %v235 = vld [vmem:[%s139 + $0x2c0] sm:$0xff]
      %v236 = vld [vmem:[%s139 + $0x2c8] sm:$0xff]
      %v237 = vld [vmem:[%s139 + $0x2d0] sm:$0xff]
      %v238 = vld [vmem:[%s139 + $0x2d8] sm:$0xff]
      %v239 = vld [vmem:[%s139 + $0x2e0] sm:$0xff]
      %v240 = vld [vmem:[%s139 + $0x2e8] sm:$0xff]
      %v241 = vld [vmem:[%s139 + $0x2f0] sm:$0xff]
      %v242 = vld [vmem:[%s139 + $0x2f8] sm:$0xff]
      %v243 = vld [vmem:[%s139 + $0x300] sm:$0xff]
      %v244 = vld [vmem:[%s139 + $0x308] sm:$0xff]
      %v245 = vld [vmem:[%s139 + $0x310] sm:$0xff]
      %v246 = vld [vmem:[%s139 + $0x318] sm:$0xff]
      %v247 = vld [vmem:[%s139 + $0x320] sm:$0xff]
      %v248 = vld [vmem:[%s139 + $0x328] sm:$0xff]
      %v249 = vld [vmem:[%s139 + $0x330] sm:$0xff]
      %v250 = vld [vmem:[%s139 + $0x338] sm:$0xff]
      %v251 = vld [vmem:[%s139 + $0x340] sm:$0xff]
      %v252 = vld [vmem:[%s139 + $0x348] sm:$0xff]
      %v253 = vld [vmem:[%s139 + $0x350] sm:$0xff]
      %v254 = vld [vmem:[%s139 + $0x358] sm:$0xff]
      %v255 = vld [vmem:[%s139 + $0x360] sm:$0xff]
      %v256 = vld [vmem:[%s139 + $0x368] sm:$0xff]
      %v257 = vld [vmem:[%s139 + $0x370] sm:$0xff]
      %v258 = vld [vmem:[%s139 + $0x378] sm:$0xff]
      %v259 = vld [vmem:[%s139 + $0x380] sm:$0xff]
      %v260 = vld [vmem:[%s139 + $0x388] sm:$0xff]
      %v261 = vld [vmem:[%s139 + $0x390] sm:$0xff]
      %v262 = vld [vmem:[%s139 + $0x398] sm:$0xff]
      %v263 = vld [vmem:[%s139 + $0x3a0] sm:$0xff]
      %v264 = vld [vmem:[%s139 + $0x3a8] sm:$0xff]
      %v265 = vld [vmem:[%s139 + $0x3b0] sm:$0xff]
      %v266 = vld [vmem:[%s139 + $0x3b8] sm:$0xff]
      %v267 = vld [vmem:[%s139 + $0x3c0] sm:$0xff]
      %v268 = vld [vmem:[%s139 + $0x3c8] sm:$0xff]
      %v269 = vld [vmem:[%s139 + $0x3d0] sm:$0xff]
      %v270 = vld [vmem:[%s139 + $0x3d8] sm:$0xff]
      %v271 = vld [vmem:[%s139 + $0x3e0] sm:$0xff]
      %v272 = vld [vmem:[%s139 + $0x3e8] sm:$0xff]
      %v273 = vld [vmem:[%s139 + $0x3f0] sm:$0xff]
      %v274 = vld [vmem:[%s139 + $0x3f8] sm:$0xff]
      %v275 = vld [vmem:[%s1] sm:$0x1]
      %v277 = vlaneseq
      %v278 = vshrl.u32 %v277, 7
      %v279 = vsub.s32 0, %v278
      %v280 = vrot.slane %v275, %v279
      %v282 = vmul.f32 %v147, %v280
      %v283 = vmul.f32 %v148, %v280
      %v284 = vmul.f32 %v149, %v280
      %v285 = vmul.f32 %v150, %v280
      %v286 = vmul.f32 %v151, %v280
      %v287 = vmul.f32 %v152, %v280
      %v288 = vmul.f32 %v153, %v280
      %v289 = vmul.f32 %v154, %v280
      %v290 = vmul.f32 %v155, %v280
      %v291 = vmul.f32 %v156, %v280
      %v292 = vmul.f32 %v157, %v280
      %v293 = vmul.f32 %v158, %v280
      %v294 = vmul.f32 %v159, %v280
      %v295 = vmul.f32 %v160, %v280
      %v296 = vmul.f32 %v161, %v280
      %v297 = vmul.f32 %v162, %v280
      %v298 = vmul.f32 %v163, %v280
      %v299 = vmul.f32 %v164, %v280
      %v300 = vmul.f32 %v165, %v280
      %v301 = vmul.f32 %v166, %v280
      %v302 = vmul.f32 %v167, %v280
      %v303 = vmul.f32 %v168, %v280
      %v304 = vmul.f32 %v169, %v280
      %v305 = vmul.f32 %v170, %v280
      %v306 = vmul.f32 %v171, %v280
      %v307 = vmul.f32 %v172, %v280
      %v308 = vmul.f32 %v173, %v280
      %v309 = vmul.f32 %v174, %v280
      %v310 = vmul.f32 %v175, %v280
      %v311 = vmul.f32 %v176, %v280
      %v312 = vmul.f32 %v177, %v280
      %v313 = vmul.f32 %v178, %v280
      %v314 = vmul.f32 %v179, %v280
      %v315 = vmul.f32 %v180, %v280
      %v316 = vmul.f32 %v181, %v280
      %v317 = vmul.f32 %v182, %v280
      %v318 = vmul.f32 %v183, %v280
      %v319 = vmul.f32 %v184, %v280
      %v320 = vmul.f32 %v185, %v280
      %v321 = vmul.f32 %v186, %v280
      %v322 = vmul.f32 %v187, %v280
      %v323 = vmul.f32 %v188, %v280
      %v324 = vmul.f32 %v189, %v280
      %v325 = vmul.f32 %v190, %v280
      %v326 = vmul.f32 %v191, %v280
      %v327 = vmul.f32 %v192, %v280
      %v328 = vmul.f32 %v193, %v280
      %v329 = vmul.f32 %v194, %v280
      %v330 = vmul.f32 %v195, %v280
      %v331 = vmul.f32 %v196, %v280
      %v332 = vmul.f32 %v197, %v280
      %v333 = vmul.f32 %v198, %v280
      %v334 = vmul.f32 %v199, %v280
      %v335 = vmul.f32 %v200, %v280
      %v336 = vmul.f32 %v201, %v280
      %v337 = vmul.f32 %v202, %v280
      %v338 = vmul.f32 %v203, %v280
      %v339 = vmul.f32 %v204, %v280
      %v340 = vmul.f32 %v205, %v280
      %v341 = vmul.f32 %v206, %v280
      %v342 = vmul.f32 %v207, %v280
      %v343 = vmul.f32 %v208, %v280
      %v344 = vmul.f32 %v209, %v280
      %v345 = vmul.f32 %v210, %v280
      %v346 = vmul.f32 %v211, %v280
      %v347 = vmul.f32 %v212, %v280
      %v348 = vmul.f32 %v213, %v280
      %v349 = vmul.f32 %v214, %v280
      %v350 = vmul.f32 %v215, %v280
      %v351 = vmul.f32 %v216, %v280
      %v352 = vmul.f32 %v217, %v280
      %v353 = vmul.f32 %v218, %v280
      %v354 = vmul.f32 %v219, %v280
      %v355 = vmul.f32 %v220, %v280
      %v356 = vmul.f32 %v221, %v280
      %v357 = vmul.f32 %v222, %v280
      %v358 = vmul.f32 %v223, %v280
      %v359 = vmul.f32 %v224, %v280
      %v360 = vmul.f32 %v225, %v280
      %v361 = vmul.f32 %v226, %v280
      %v362 = vmul.f32 %v227, %v280
      %v363 = vmul.f32 %v228, %v280
      %v364 = vmul.f32 %v229, %v280
      %v365 = vmul.f32 %v230, %v280
      %v366 = vmul.f32 %v231, %v280
      %v367 = vmul.f32 %v232, %v280
      %v368 = vmul.f32 %v233, %v280
      %v369 = vmul.f32 %v234, %v280
      %v370 = vmul.f32 %v235, %v280
      %v371 = vmul.f32 %v236, %v280
      %v372 = vmul.f32 %v237, %v280
      %v373 = vmul.f32 %v238, %v280
      %v374 = vmul.f32 %v239, %v280
      %v375 = vmul.f32 %v240, %v280
      %v376 = vmul.f32 %v241, %v280
      %v377 = vmul.f32 %v242, %v280
      %v378 = vmul.f32 %v243, %v280
      %v379 = vmul.f32 %v244, %v280
      %v380 = vmul.f32 %v245, %v280
      %v381 = vmul.f32 %v246, %v280
      %v382 = vmul.f32 %v247, %v280
      %v383 = vmul.f32 %v248, %v280
      %v384 = vmul.f32 %v249, %v280
      %v385 = vmul.f32 %v250, %v280
      %v386 = vmul.f32 %v251, %v280
      %v387 = vmul.f32 %v252, %v280
      %v388 = vmul.f32 %v253, %v280
      %v389 = vmul.f32 %v254, %v280
      %v390 = vmul.f32 %v255, %v280
      %v391 = vmul.f32 %v256, %v280
      %v392 = vmul.f32 %v257, %v280
      %v393 = vmul.f32 %v258, %v280
      %v394 = vmul.f32 %v259, %v280
      %v395 = vmul.f32 %v260, %v280
      %v396 = vmul.f32 %v261, %v280
      %v397 = vmul.f32 %v262, %v280
      %v398 = vmul.f32 %v263, %v280
      %v399 = vmul.f32 %v264, %v280
      %v400 = vmul.f32 %v265, %v280
      %v401 = vmul.f32 %v266, %v280
      %v402 = vmul.f32 %v267, %v280
      %v403 = vmul.f32 %v268, %v280
      %v404 = vmul.f32 %v269, %v280
      %v405 = vmul.f32 %v270, %v280
      %v406 = vmul.f32 %v271, %v280
      %v407 = vmul.f32 %v272, %v280
      %v408 = vmul.f32 %v273, %v280
      %v409 = vmul.f32 %v274, %v280
      %vm410 = vcmask 261120
      %v411 = vsel %vm410, %v282, 0.0
      %412 = vadd.xlane.f32.xlu0 %v411
      %v413 = vpop.xlane.xlu0 %412
      %v414 = vsel %vm410, %v283, 0.0
      %415 = vadd.xlane.f32.xlu0 %v414
      %v416 = vpop.xlane.xlu0 %415
      %v417 = vsel %vm410, %v284, 0.0
      %418 = vadd.xlane.f32.xlu0 %v417
      %v419 = vpop.xlane.xlu0 %418
      %v420 = vsel %vm410, %v285, 0.0
      %421 = vadd.xlane.f32.xlu0 %v420
      %v422 = vpop.xlane.xlu0 %421
      %v423 = vsel %vm410, %v286, 0.0
      %424 = vadd.xlane.f32.xlu0 %v423
      %v425 = vpop.xlane.xlu0 %424
      %v426 = vsel %vm410, %v287, 0.0
      %427 = vadd.xlane.f32.xlu0 %v426
      %v428 = vpop.xlane.xlu0 %427
      %v429 = vsel %vm410, %v288, 0.0
      %430 = vadd.xlane.f32.xlu0 %v429
      %v431 = vpop.xlane.xlu0 %430
      %v432 = vsel %vm410, %v289, 0.0
      %433 = vadd.xlane.f32.xlu0 %v432
      %v434 = vpop.xlane.xlu0 %433
      %v435 = vsel %vm410, %v290, 0.0
      %436 = vadd.xlane.f32.xlu0 %v435
      %v437 = vpop.xlane.xlu0 %436
      %v438 = vsel %vm410, %v291, 0.0
      %439 = vadd.xlane.f32.xlu0 %v438
      %v440 = vpop.xlane.xlu0 %439
      %v441 = vsel %vm410, %v292, 0.0
      %442 = vadd.xlane.f32.xlu0 %v441
      %v443 = vpop.xlane.xlu0 %442
      %v444 = vsel %vm410, %v293, 0.0
      %445 = vadd.xlane.f32.xlu0 %v444
      %v446 = vpop.xlane.xlu0 %445
      %v447 = vsel %vm410, %v294, 0.0
      %448 = vadd.xlane.f32.xlu0 %v447
      %v449 = vpop.xlane.xlu0 %448
      %v450 = vsel %vm410, %v295, 0.0
      %451 = vadd.xlane.f32.xlu0 %v450
      %v452 = vpop.xlane.xlu0 %451
      %v453 = vsel %vm410, %v296, 0.0
      %454 = vadd.xlane.f32.xlu0 %v453
      %v455 = vpop.xlane.xlu0 %454
      %v456 = vsel %vm410, %v297, 0.0
      %457 = vadd.xlane.f32.xlu0 %v456
      %v458 = vpop.xlane.xlu0 %457
      %v459 = vsel %vm410, %v298, 0.0
      %460 = vadd.xlane.f32.xlu0 %v459
      %v461 = vpop.xlane.xlu0 %460
      %v462 = vsel %vm410, %v299, 0.0
      %463 = vadd.xlane.f32.xlu0 %v462
      %v464 = vpop.xlane.xlu0 %463
      %v465 = vsel %vm410, %v300, 0.0
      %466 = vadd.xlane.f32.xlu0 %v465
      %v467 = vpop.xlane.xlu0 %466
      %v468 = vsel %vm410, %v301, 0.0
      %469 = vadd.xlane.f32.xlu0 %v468
      %v470 = vpop.xlane.xlu0 %469
      %v471 = vsel %vm410, %v302, 0.0
      %472 = vadd.xlane.f32.xlu0 %v471
      %v473 = vpop.xlane.xlu0 %472
      %v474 = vsel %vm410, %v303, 0.0
      %475 = vadd.xlane.f32.xlu0 %v474
      %v476 = vpop.xlane.xlu0 %475
      %v477 = vsel %vm410, %v304, 0.0
      %478 = vadd.xlane.f32.xlu0 %v477
      %v479 = vpop.xlane.xlu0 %478
      %v480 = vsel %vm410, %v305, 0.0
      %481 = vadd.xlane.f32.xlu0 %v480
      %v482 = vpop.xlane.xlu0 %481
      %v483 = vsel %vm410, %v306, 0.0
      %484 = vadd.xlane.f32.xlu0 %v483
      %v485 = vpop.xlane.xlu0 %484
      %v486 = vsel %vm410, %v307, 0.0
      %487 = vadd.xlane.f32.xlu0 %v486
      %v488 = vpop.xlane.xlu0 %487
      %v489 = vsel %vm410, %v308, 0.0
      %490 = vadd.xlane.f32.xlu0 %v489
      %v491 = vpop.xlane.xlu0 %490
      %v492 = vsel %vm410, %v309, 0.0
      %493 = vadd.xlane.f32.xlu0 %v492
      %v494 = vpop.xlane.xlu0 %493
      %v495 = vsel %vm410, %v310, 0.0
      %496 = vadd.xlane.f32.xlu0 %v495
      %v497 = vpop.xlane.xlu0 %496
      %v498 = vsel %vm410, %v311, 0.0
      %499 = vadd.xlane.f32.xlu0 %v498
      %v500 = vpop.xlane.xlu0 %499
      %v501 = vsel %vm410, %v312, 0.0
      %502 = vadd.xlane.f32.xlu0 %v501
      %v503 = vpop.xlane.xlu0 %502
      %v504 = vsel %vm410, %v313, 0.0
      %505 = vadd.xlane.f32.xlu0 %v504
      %v506 = vpop.xlane.xlu0 %505
      %v507 = vsel %vm410, %v314, 0.0
      %508 = vadd.xlane.f32.xlu0 %v507
      %v509 = vpop.xlane.xlu0 %508
      %v510 = vsel %vm410, %v315, 0.0
      %511 = vadd.xlane.f32.xlu0 %v510
      %v512 = vpop.xlane.xlu0 %511
      %v513 = vsel %vm410, %v316, 0.0
      %514 = vadd.xlane.f32.xlu0 %v513
      %v515 = vpop.xlane.xlu0 %514
      %v516 = vsel %vm410, %v317, 0.0
      %517 = vadd.xlane.f32.xlu0 %v516
      %v518 = vpop.xlane.xlu0 %517
      %v519 = vsel %vm410, %v318, 0.0
      %520 = vadd.xlane.f32.xlu0 %v519
      %v521 = vpop.xlane.xlu0 %520
      %v522 = vsel %vm410, %v319, 0.0
      %523 = vadd.xlane.f32.xlu0 %v522
      %v524 = vpop.xlane.xlu0 %523
      %v525 = vsel %vm410, %v320, 0.0
      %526 = vadd.xlane.f32.xlu0 %v525
      %v527 = vpop.xlane.xlu0 %526
      %v528 = vsel %vm410, %v321, 0.0
      %529 = vadd.xlane.f32.xlu0 %v528
      %v530 = vpop.xlane.xlu0 %529
      %v531 = vsel %vm410, %v322, 0.0
      %532 = vadd.xlane.f32.xlu0 %v531
      %v533 = vpop.xlane.xlu0 %532
      %v534 = vsel %vm410, %v323, 0.0
      %535 = vadd.xlane.f32.xlu0 %v534
      %v536 = vpop.xlane.xlu0 %535
      %v537 = vsel %vm410, %v324, 0.0
      %538 = vadd.xlane.f32.xlu0 %v537
      %v539 = vpop.xlane.xlu0 %538
      %v540 = vsel %vm410, %v325, 0.0
      %541 = vadd.xlane.f32.xlu0 %v540
      %v542 = vpop.xlane.xlu0 %541
      %v543 = vsel %vm410, %v326, 0.0
      %544 = vadd.xlane.f32.xlu0 %v543
      %v545 = vpop.xlane.xlu0 %544
      %v546 = vsel %vm410, %v327, 0.0
      %547 = vadd.xlane.f32.xlu0 %v546
      %v548 = vpop.xlane.xlu0 %547
      %v549 = vsel %vm410, %v328, 0.0
      %550 = vadd.xlane.f32.xlu0 %v549
      %v551 = vpop.xlane.xlu0 %550
      %v552 = vsel %vm410, %v329, 0.0
      %553 = vadd.xlane.f32.xlu0 %v552
      %v554 = vpop.xlane.xlu0 %553
      %v555 = vsel %vm410, %v330, 0.0
      %556 = vadd.xlane.f32.xlu0 %v555
      %v557 = vpop.xlane.xlu0 %556
      %v558 = vsel %vm410, %v331, 0.0
      %559 = vadd.xlane.f32.xlu0 %v558
      %v560 = vpop.xlane.xlu0 %559
      %v561 = vsel %vm410, %v332, 0.0
      %562 = vadd.xlane.f32.xlu0 %v561
      %v563 = vpop.xlane.xlu0 %562
      %v564 = vsel %vm410, %v333, 0.0
      %565 = vadd.xlane.f32.xlu0 %v564
      %v566 = vpop.xlane.xlu0 %565
      %v567 = vsel %vm410, %v334, 0.0
      %568 = vadd.xlane.f32.xlu0 %v567
      %v569 = vpop.xlane.xlu0 %568
      %v570 = vsel %vm410, %v335, 0.0
      %571 = vadd.xlane.f32.xlu0 %v570
      %v572 = vpop.xlane.xlu0 %571
      %v573 = vsel %vm410, %v336, 0.0
      %574 = vadd.xlane.f32.xlu0 %v573
      %v575 = vpop.xlane.xlu0 %574
      %v576 = vsel %vm410, %v337, 0.0
      %577 = vadd.xlane.f32.xlu0 %v576
      %v578 = vpop.xlane.xlu0 %577
      %v579 = vsel %vm410, %v338, 0.0
      %580 = vadd.xlane.f32.xlu0 %v579
      %v581 = vpop.xlane.xlu0 %580
      %v582 = vsel %vm410, %v339, 0.0
      %583 = vadd.xlane.f32.xlu0 %v582
      %v584 = vpop.xlane.xlu0 %583
      %v585 = vsel %vm410, %v340, 0.0
      %586 = vadd.xlane.f32.xlu0 %v585
      %v587 = vpop.xlane.xlu0 %586
      %v588 = vsel %vm410, %v341, 0.0
      %589 = vadd.xlane.f32.xlu0 %v588
      %v590 = vpop.xlane.xlu0 %589
      %v591 = vsel %vm410, %v342, 0.0
      %592 = vadd.xlane.f32.xlu0 %v591
      %v593 = vpop.xlane.xlu0 %592
      %v594 = vsel %vm410, %v343, 0.0
      %595 = vadd.xlane.f32.xlu0 %v594
      %v596 = vpop.xlane.xlu0 %595
      %v597 = vsel %vm410, %v344, 0.0
      %598 = vadd.xlane.f32.xlu0 %v597
      %v599 = vpop.xlane.xlu0 %598
      %v600 = vsel %vm410, %v345, 0.0
      %601 = vadd.xlane.f32.xlu0 %v600
      %v602 = vpop.xlane.xlu0 %601
      %v603 = vsel %vm410, %v346, 0.0
      %604 = vadd.xlane.f32.xlu0 %v603
      %v605 = vpop.xlane.xlu0 %604
      %v606 = vsel %vm410, %v347, 0.0
      %607 = vadd.xlane.f32.xlu0 %v606
      %v608 = vpop.xlane.xlu0 %607
      %v609 = vsel %vm410, %v348, 0.0
      %610 = vadd.xlane.f32.xlu0 %v609
      %v611 = vpop.xlane.xlu0 %610
      %v612 = vsel %vm410, %v349, 0.0
      %613 = vadd.xlane.f32.xlu0 %v612
      %v614 = vpop.xlane.xlu0 %613
      %v615 = vsel %vm410, %v350, 0.0
      %616 = vadd.xlane.f32.xlu0 %v615
      %v617 = vpop.xlane.xlu0 %616
      %v618 = vsel %vm410, %v351, 0.0
      %619 = vadd.xlane.f32.xlu0 %v618
      %v620 = vpop.xlane.xlu0 %619
      %v621 = vsel %vm410, %v352, 0.0
      %622 = vadd.xlane.f32.xlu0 %v621
      %v623 = vpop.xlane.xlu0 %622
      %v624 = vsel %vm410, %v353, 0.0
      %625 = vadd.xlane.f32.xlu0 %v624
      %v626 = vpop.xlane.xlu0 %625
      %v627 = vsel %vm410, %v354, 0.0
      %628 = vadd.xlane.f32.xlu0 %v627
      %v629 = vpop.xlane.xlu0 %628
      %v630 = vsel %vm410, %v355, 0.0
      %631 = vadd.xlane.f32.xlu0 %v630
      %v632 = vpop.xlane.xlu0 %631
      %v633 = vsel %vm410, %v356, 0.0
      %634 = vadd.xlane.f32.xlu0 %v633
      %v635 = vpop.xlane.xlu0 %634
      %v636 = vsel %vm410, %v357, 0.0
      %637 = vadd.xlane.f32.xlu0 %v636
      %v638 = vpop.xlane.xlu0 %637
      %v639 = vsel %vm410, %v358, 0.0
      %640 = vadd.xlane.f32.xlu0 %v639
      %v641 = vpop.xlane.xlu0 %640
      %v642 = vsel %vm410, %v359, 0.0
      %643 = vadd.xlane.f32.xlu0 %v642
      %v644 = vpop.xlane.xlu0 %643
      %v645 = vsel %vm410, %v360, 0.0
      %646 = vadd.xlane.f32.xlu0 %v645
      %v647 = vpop.xlane.xlu0 %646
      %v648 = vsel %vm410, %v361, 0.0
      %649 = vadd.xlane.f32.xlu0 %v648
      %v650 = vpop.xlane.xlu0 %649
      %v651 = vsel %vm410, %v362, 0.0
      %652 = vadd.xlane.f32.xlu0 %v651
      %v653 = vpop.xlane.xlu0 %652
      %v654 = vsel %vm410, %v363, 0.0
      %655 = vadd.xlane.f32.xlu0 %v654
      %v656 = vpop.xlane.xlu0 %655
      %v657 = vsel %vm410, %v364, 0.0
      %658 = vadd.xlane.f32.xlu0 %v657
      %v659 = vpop.xlane.xlu0 %658
      %v660 = vsel %vm410, %v365, 0.0
      %661 = vadd.xlane.f32.xlu0 %v660
      %v662 = vpop.xlane.xlu0 %661
      %v663 = vsel %vm410, %v366, 0.0
      %664 = vadd.xlane.f32.xlu0 %v663
      %v665 = vpop.xlane.xlu0 %664
      %v666 = vsel %vm410, %v367, 0.0
      %667 = vadd.xlane.f32.xlu0 %v666
      %v668 = vpop.xlane.xlu0 %667
      %v669 = vsel %vm410, %v368, 0.0
      %670 = vadd.xlane.f32.xlu0 %v669
      %v671 = vpop.xlane.xlu0 %670
      %v672 = vsel %vm410, %v369, 0.0
      %673 = vadd.xlane.f32.xlu0 %v672
      %v674 = vpop.xlane.xlu0 %673
      %v675 = vsel %vm410, %v370, 0.0
      %676 = vadd.xlane.f32.xlu0 %v675
      %v677 = vpop.xlane.xlu0 %676
      %v678 = vsel %vm410, %v371, 0.0
      %679 = vadd.xlane.f32.xlu0 %v678
      %v680 = vpop.xlane.xlu0 %679
      %v681 = vsel %vm410, %v372, 0.0
      %682 = vadd.xlane.f32.xlu0 %v681
      %v683 = vpop.xlane.xlu0 %682
      %v684 = vsel %vm410, %v373, 0.0
      %685 = vadd.xlane.f32.xlu0 %v684
      %v686 = vpop.xlane.xlu0 %685
      %v687 = vsel %vm410, %v374, 0.0
      %688 = vadd.xlane.f32.xlu0 %v687
      %v689 = vpop.xlane.xlu0 %688
      %v690 = vsel %vm410, %v375, 0.0
      %691 = vadd.xlane.f32.xlu0 %v690
      %v692 = vpop.xlane.xlu0 %691
      %v693 = vsel %vm410, %v376, 0.0
      %694 = vadd.xlane.f32.xlu0 %v693
      %v695 = vpop.xlane.xlu0 %694
      %v696 = vsel %vm410, %v377, 0.0
      %697 = vadd.xlane.f32.xlu0 %v696
      %v698 = vpop.xlane.xlu0 %697
      %v699 = vsel %vm410, %v378, 0.0
      %700 = vadd.xlane.f32.xlu0 %v699
      %v701 = vpop.xlane.xlu0 %700
      %v702 = vsel %vm410, %v379, 0.0
      %703 = vadd.xlane.f32.xlu0 %v702
      %v704 = vpop.xlane.xlu0 %703
      %v705 = vsel %vm410, %v380, 0.0
      %706 = vadd.xlane.f32.xlu0 %v705
      %v707 = vpop.xlane.xlu0 %706
      %v708 = vsel %vm410, %v381, 0.0
      %709 = vadd.xlane.f32.xlu0 %v708
      %v710 = vpop.xlane.xlu0 %709
      %v711 = vsel %vm410, %v382, 0.0
      %712 = vadd.xlane.f32.xlu0 %v711
      %v713 = vpop.xlane.xlu0 %712
      %v714 = vsel %vm410, %v383, 0.0
      %715 = vadd.xlane.f32.xlu0 %v714
      %v716 = vpop.xlane.xlu0 %715
      %v717 = vsel %vm410, %v384, 0.0
      %718 = vadd.xlane.f32.xlu0 %v717
      %v719 = vpop.xlane.xlu0 %718
      %v720 = vsel %vm410, %v385, 0.0
      %721 = vadd.xlane.f32.xlu0 %v720
      %v722 = vpop.xlane.xlu0 %721
      %v723 = vsel %vm410, %v386, 0.0
      %724 = vadd.xlane.f32.xlu0 %v723
      %v725 = vpop.xlane.xlu0 %724
      %v726 = vsel %vm410, %v387, 0.0
      %727 = vadd.xlane.f32.xlu0 %v726
      %v728 = vpop.xlane.xlu0 %727
      %v729 = vsel %vm410, %v388, 0.0
      %730 = vadd.xlane.f32.xlu0 %v729
      %v731 = vpop.xlane.xlu0 %730
      %v732 = vsel %vm410, %v389, 0.0
      %733 = vadd.xlane.f32.xlu0 %v732
      %v734 = vpop.xlane.xlu0 %733
      %v735 = vsel %vm410, %v390, 0.0
      %736 = vadd.xlane.f32.xlu0 %v735
      %v737 = vpop.xlane.xlu0 %736
      %v738 = vsel %vm410, %v391, 0.0
      %739 = vadd.xlane.f32.xlu0 %v738
      %v740 = vpop.xlane.xlu0 %739
      %v741 = vsel %vm410, %v392, 0.0
      %742 = vadd.xlane.f32.xlu0 %v741
      %v743 = vpop.xlane.xlu0 %742
      %v744 = vsel %vm410, %v393, 0.0
      %745 = vadd.xlane.f32.xlu0 %v744
      %v746 = vpop.xlane.xlu0 %745
      %v747 = vsel %vm410, %v394, 0.0
      %748 = vadd.xlane.f32.xlu0 %v747
      %v749 = vpop.xlane.xlu0 %748
      %v750 = vsel %vm410, %v395, 0.0
      %751 = vadd.xlane.f32.xlu0 %v750
      %v752 = vpop.xlane.xlu0 %751
      %v753 = vsel %vm410, %v396, 0.0
      %754 = vadd.xlane.f32.xlu0 %v753
      %v755 = vpop.xlane.xlu0 %754
      %v756 = vsel %vm410, %v397, 0.0
      %757 = vadd.xlane.f32.xlu0 %v756
      %v758 = vpop.xlane.xlu0 %757
      %v759 = vsel %vm410, %v398, 0.0
      %760 = vadd.xlane.f32.xlu0 %v759
      %v761 = vpop.xlane.xlu0 %760
      %v762 = vsel %vm410, %v399, 0.0
      %763 = vadd.xlane.f32.xlu0 %v762
      %v764 = vpop.xlane.xlu0 %763
      %v765 = vsel %vm410, %v400, 0.0
      %766 = vadd.xlane.f32.xlu0 %v765
      %v767 = vpop.xlane.xlu0 %766
      %v768 = vsel %vm410, %v401, 0.0
      %769 = vadd.xlane.f32.xlu0 %v768
      %v770 = vpop.xlane.xlu0 %769
      %v771 = vsel %vm410, %v402, 0.0
      %772 = vadd.xlane.f32.xlu0 %v771
      %v773 = vpop.xlane.xlu0 %772
      %v774 = vsel %vm410, %v403, 0.0
      %775 = vadd.xlane.f32.xlu0 %v774
      %v776 = vpop.xlane.xlu0 %775
      %v777 = vsel %vm410, %v404, 0.0
      %778 = vadd.xlane.f32.xlu0 %v777
      %v779 = vpop.xlane.xlu0 %778
      %v780 = vsel %vm410, %v405, 0.0
      %781 = vadd.xlane.f32.xlu0 %v780
      %v782 = vpop.xlane.xlu0 %781
      %v783 = vsel %vm410, %v406, 0.0
      %784 = vadd.xlane.f32.xlu0 %v783
      %v785 = vpop.xlane.xlu0 %784
      %v786 = vsel %vm410, %v407, 0.0
      %787 = vadd.xlane.f32.xlu0 %v786
      %v788 = vpop.xlane.xlu0 %787
      %v789 = vsel %vm410, %v408, 0.0
      %790 = vadd.xlane.f32.xlu0 %v789
      %v791 = vpop.xlane.xlu0 %790
      %v792 = vsel %vm410, %v409, 0.0
      %793 = vadd.xlane.f32.xlu0 %v792
      %v794 = vpop.xlane.xlu0 %793
      %v795 = vmul.f32 %v282, %v280
      %v796 = vmul.f32 %v283, %v280
      %v797 = vmul.f32 %v284, %v280
      %v798 = vmul.f32 %v285, %v280
      %v799 = vmul.f32 %v286, %v280
      %v800 = vmul.f32 %v287, %v280
      %v801 = vmul.f32 %v288, %v280
      %v802 = vmul.f32 %v289, %v280
      %v803 = vmul.f32 %v290, %v280
      %v804 = vmul.f32 %v291, %v280
      %v805 = vmul.f32 %v292, %v280
      %v806 = vmul.f32 %v293, %v280
      %v807 = vmul.f32 %v294, %v280
      %v808 = vmul.f32 %v295, %v280
      %v809 = vmul.f32 %v296, %v280
      %v810 = vmul.f32 %v297, %v280
      %v811 = vmul.f32 %v298, %v280
      %v812 = vmul.f32 %v299, %v280
      %v813 = vmul.f32 %v300, %v280
      %v814 = vmul.f32 %v301, %v280
      %v815 = vmul.f32 %v302, %v280
      %v816 = vmul.f32 %v303, %v280
      %v817 = vmul.f32 %v304, %v280
      %v818 = vmul.f32 %v305, %v280
      %v819 = vmul.f32 %v306, %v280
      %v820 = vmul.f32 %v307, %v280
      %v821 = vmul.f32 %v308, %v280
      %v822 = vmul.f32 %v309, %v280
      %v823 = vmul.f32 %v310, %v280
      %v824 = vmul.f32 %v311, %v280
      %v825 = vmul.f32 %v312, %v280
      %v826 = vmul.f32 %v313, %v280
      %v827 = vmul.f32 %v314, %v280
      %v828 = vmul.f32 %v315, %v280
      %v829 = vmul.f32 %v316, %v280
      %v830 = vmul.f32 %v317, %v280
      %v831 = vmul.f32 %v318, %v280
      %v832 = vmul.f32 %v319, %v280
      %v833 = vmul.f32 %v320, %v280
      %v834 = vmul.f32 %v321, %v280
      %v835 = vmul.f32 %v322, %v280
      %v836 = vmul.f32 %v323, %v280
      %v837 = vmul.f32 %v324, %v280
      %v838 = vmul.f32 %v325, %v280
      %v839 = vmul.f32 %v326, %v280
      %v840 = vmul.f32 %v327, %v280
      %v841 = vmul.f32 %v328, %v280
      %v842 = vmul.f32 %v329, %v280
      %v843 = vmul.f32 %v330, %v280
      %v844 = vmul.f32 %v331, %v280
      %v845 = vmul.f32 %v332, %v280
      %v846 = vmul.f32 %v333, %v280
      %v847 = vmul.f32 %v334, %v280
      %v848 = vmul.f32 %v335, %v280
      %v849 = vmul.f32 %v336, %v280
      %v850 = vmul.f32 %v337, %v280
      %v851 = vmul.f32 %v338, %v280
      %v852 = vmul.f32 %v339, %v280
      %v853 = vmul.f32 %v340, %v280
      %v854 = vmul.f32 %v341, %v280
      %v855 = vmul.f32 %v342, %v280
      %v856 = vmul.f32 %v343, %v280
      %v857 = vmul.f32 %v344, %v280
      %v858 = vmul.f32 %v345, %v280
      %v859 = vmul.f32 %v346, %v280
      %v860 = vmul.f32 %v347, %v280
      %v861 = vmul.f32 %v348, %v280
      %v862 = vmul.f32 %v349, %v280
      %v863 = vmul.f32 %v350, %v280
      %v864 = vmul.f32 %v351, %v280
      %v865 = vmul.f32 %v352, %v280
      %v866 = vmul.f32 %v353, %v280
      %v867 = vmul.f32 %v354, %v280
      %v868 = vmul.f32 %v355, %v280
      %v869 = vmul.f32 %v356, %v280
      %v870 = vmul.f32 %v357, %v280
      %v871 = vmul.f32 %v358, %v280
      %v872 = vmul.f32 %v359, %v280
      %v873 = vmul.f32 %v360, %v280
      %v874 = vmul.f32 %v361, %v280
      %v875 = vmul.f32 %v362, %v280
      %v876 = vmul.f32 %v363, %v280
      %v877 = vmul.f32 %v364, %v280
      %v878 = vmul.f32 %v365, %v280
      %v879 = vmul.f32 %v366, %v280
      %v880 = vmul.f32 %v367, %v280
      %v881 = vmul.f32 %v368, %v280
      %v882 = vmul.f32 %v369, %v280
      %v883 = vmul.f32 %v370, %v280
      %v884 = vmul.f32 %v371, %v280
      %v885 = vmul.f32 %v372, %v280
      %v886 = vmul.f32 %v373, %v280
      %v887 = vmul.f32 %v374, %v280
      %v888 = vmul.f32 %v375, %v280
      %v889 = vmul.f32 %v376, %v280
      %v890 = vmul.f32 %v377, %v280
      %v891 = vmul.f32 %v378, %v280
      %v892 = vmul.f32 %v379, %v280
      %v893 = vmul.f32 %v380, %v280
      %v894 = vmul.f32 %v381, %v280
      %v895 = vmul.f32 %v382, %v280
      %v896 = vmul.f32 %v383, %v280
      %v897 = vmul.f32 %v384, %v280
      %v898 = vmul.f32 %v385, %v280
      %v899 = vmul.f32 %v386, %v280
      %v900 = vmul.f32 %v387, %v280
      %v901 = vmul.f32 %v388, %v280
      %v902 = vmul.f32 %v389, %v280
      %v903 = vmul.f32 %v390, %v280
      %v904 = vmul.f32 %v391, %v280
      %v905 = vmul.f32 %v392, %v280
      %v906 = vmul.f32 %v393, %v280
      %v907 = vmul.f32 %v394, %v280
      %v908 = vmul.f32 %v395, %v280
      %v909 = vmul.f32 %v396, %v280
      %v910 = vmul.f32 %v397, %v280
      %v911 = vmul.f32 %v398, %v280
      %v912 = vmul.f32 %v399, %v280
      %v913 = vmul.f32 %v400, %v280
      %v914 = vmul.f32 %v401, %v280
      %v915 = vmul.f32 %v402, %v280
      %v916 = vmul.f32 %v403, %v280
      %v917 = vmul.f32 %v404, %v280
      %v918 = vmul.f32 %v405, %v280
      %v919 = vmul.f32 %v406, %v280
      %v920 = vmul.f32 %v407, %v280
      %v921 = vmul.f32 %v408, %v280
      %v922 = vmul.f32 %v409, %v280
      %v923 = vsel %vm410, %v795, 0.0
      %924 = vadd.xlane.f32.xlu0 %v923
      %v925 = vpop.xlane.xlu0 %924
      %v926 = vsel %vm410, %v796, 0.0
      %927 = vadd.xlane.f32.xlu0 %v926
      %v928 = vpop.xlane.xlu0 %927
      %v929 = vsel %vm410, %v797, 0.0
      %930 = vadd.xlane.f32.xlu0 %v929
      %v931 = vpop.xlane.xlu0 %930
      %v932 = vsel %vm410, %v798, 0.0
      %933 = vadd.xlane.f32.xlu0 %v932
      %v934 = vpop.xlane.xlu0 %933
      %v935 = vsel %vm410, %v799, 0.0
      %936 = vadd.xlane.f32.xlu0 %v935
      %v937 = vpop.xlane.xlu0 %936
      %v938 = vsel %vm410, %v800, 0.0
      %939 = vadd.xlane.f32.xlu0 %v938
      %v940 = vpop.xlane.xlu0 %939
      %v941 = vsel %vm410, %v801, 0.0
      %942 = vadd.xlane.f32.xlu0 %v941
      %v943 = vpop.xlane.xlu0 %942
      %v944 = vsel %vm410, %v802, 0.0
      %945 = vadd.xlane.f32.xlu0 %v944
      %v946 = vpop.xlane.xlu0 %945
      %v947 = vsel %vm410, %v803, 0.0
      %948 = vadd.xlane.f32.xlu0 %v947
      %v949 = vpop.xlane.xlu0 %948
      %v950 = vsel %vm410, %v804, 0.0
      %951 = vadd.xlane.f32.xlu0 %v950
      %v952 = vpop.xlane.xlu0 %951
      %v953 = vsel %vm410, %v805, 0.0
      %954 = vadd.xlane.f32.xlu0 %v953
      %v955 = vpop.xlane.xlu0 %954
      %v956 = vsel %vm410, %v806, 0.0
      %957 = vadd.xlane.f32.xlu0 %v956
      %v958 = vpop.xlane.xlu0 %957
      %v959 = vsel %vm410, %v807, 0.0
      %960 = vadd.xlane.f32.xlu0 %v959
      %v961 = vpop.xlane.xlu0 %960
      %v962 = vsel %vm410, %v808, 0.0
      %963 = vadd.xlane.f32.xlu0 %v962
      %v964 = vpop.xlane.xlu0 %963
      %v965 = vsel %vm410, %v809, 0.0
      %966 = vadd.xlane.f32.xlu0 %v965
      %v967 = vpop.xlane.xlu0 %966
      %v968 = vsel %vm410, %v810, 0.0
      %969 = vadd.xlane.f32.xlu0 %v968
      %v970 = vpop.xlane.xlu0 %969
      %v971 = vsel %vm410, %v811, 0.0
      %972 = vadd.xlane.f32.xlu0 %v971
      %v973 = vpop.xlane.xlu0 %972
      %v974 = vsel %vm410, %v812, 0.0
      %975 = vadd.xlane.f32.xlu0 %v974
      %v976 = vpop.xlane.xlu0 %975
      %v977 = vsel %vm410, %v813, 0.0
      %978 = vadd.xlane.f32.xlu0 %v977
      %v979 = vpop.xlane.xlu0 %978
      %v980 = vsel %vm410, %v814, 0.0
      %981 = vadd.xlane.f32.xlu0 %v980
      %v982 = vpop.xlane.xlu0 %981
      %v983 = vsel %vm410, %v815, 0.0
      %984 = vadd.xlane.f32.xlu0 %v983
      %v985 = vpop.xlane.xlu0 %984
      %v986 = vsel %vm410, %v816, 0.0
      %987 = vadd.xlane.f32.xlu0 %v986
      %v988 = vpop.xlane.xlu0 %987
      %v989 = vsel %vm410, %v817, 0.0
      %990 = vadd.xlane.f32.xlu0 %v989
      %v991 = vpop.xlane.xlu0 %990
      %v992 = vsel %vm410, %v818, 0.0
      %993 = vadd.xlane.f32.xlu0 %v992
      %v994 = vpop.xlane.xlu0 %993
      %v995 = vsel %vm410, %v819, 0.0
      %996 = vadd.xlane.f32.xlu0 %v995
      %v997 = vpop.xlane.xlu0 %996
      %v998 = vsel %vm410, %v820, 0.0
      %999 = vadd.xlane.f32.xlu0 %v998
      %v1000 = vpop.xlane.xlu0 %999
      %v1001 = vsel %vm410, %v821, 0.0
      %1002 = vadd.xlane.f32.xlu0 %v1001
      %v1003 = vpop.xlane.xlu0 %1002
      %v1004 = vsel %vm410, %v822, 0.0
      %1005 = vadd.xlane.f32.xlu0 %v1004
      %v1006 = vpop.xlane.xlu0 %1005
      %v1007 = vsel %vm410, %v823, 0.0
      %1008 = vadd.xlane.f32.xlu0 %v1007
      %v1009 = vpop.xlane.xlu0 %1008
      %v1010 = vsel %vm410, %v824, 0.0
      %1011 = vadd.xlane.f32.xlu0 %v1010
      %v1012 = vpop.xlane.xlu0 %1011
      %v1013 = vsel %vm410, %v825, 0.0
      %1014 = vadd.xlane.f32.xlu0 %v1013
      %v1015 = vpop.xlane.xlu0 %1014
      %v1016 = vsel %vm410, %v826, 0.0
      %1017 = vadd.xlane.f32.xlu0 %v1016
      %v1018 = vpop.xlane.xlu0 %1017
      %v1019 = vsel %vm410, %v827, 0.0
      %1020 = vadd.xlane.f32.xlu0 %v1019
      %v1021 = vpop.xlane.xlu0 %1020
      %v1022 = vsel %vm410, %v828, 0.0
      %1023 = vadd.xlane.f32.xlu0 %v1022
      %v1024 = vpop.xlane.xlu0 %1023
      %v1025 = vsel %vm410, %v829, 0.0
      %1026 = vadd.xlane.f32.xlu0 %v1025
      %v1027 = vpop.xlane.xlu0 %1026
      %v1028 = vsel %vm410, %v830, 0.0
      %1029 = vadd.xlane.f32.xlu0 %v1028
      %v1030 = vpop.xlane.xlu0 %1029
      %v1031 = vsel %vm410, %v831, 0.0
      %1032 = vadd.xlane.f32.xlu0 %v1031
      %v1033 = vpop.xlane.xlu0 %1032
      %v1034 = vsel %vm410, %v832, 0.0
      %1035 = vadd.xlane.f32.xlu0 %v1034
      %v1036 = vpop.xlane.xlu0 %1035
      %v1037 = vsel %vm410, %v833, 0.0
      %1038 = vadd.xlane.f32.xlu0 %v1037
      %v1039 = vpop.xlane.xlu0 %1038
      %v1040 = vsel %vm410, %v834, 0.0
      %1041 = vadd.xlane.f32.xlu0 %v1040
      %v1042 = vpop.xlane.xlu0 %1041
      %v1043 = vsel %vm410, %v835, 0.0
      %1044 = vadd.xlane.f32.xlu0 %v1043
      %v1045 = vpop.xlane.xlu0 %1044
      %v1046 = vsel %vm410, %v836, 0.0
      %1047 = vadd.xlane.f32.xlu0 %v1046
      %v1048 = vpop.xlane.xlu0 %1047
      %v1049 = vsel %vm410, %v837, 0.0
      %1050 = vadd.xlane.f32.xlu0 %v1049
      %v1051 = vpop.xlane.xlu0 %1050
      %v1052 = vsel %vm410, %v838, 0.0
      %1053 = vadd.xlane.f32.xlu0 %v1052
      %v1054 = vpop.xlane.xlu0 %1053
      %v1055 = vsel %vm410, %v839, 0.0
      %1056 = vadd.xlane.f32.xlu0 %v1055
      %v1057 = vpop.xlane.xlu0 %1056
      %v1058 = vsel %vm410, %v840, 0.0
      %1059 = vadd.xlane.f32.xlu0 %v1058
      %v1060 = vpop.xlane.xlu0 %1059
      %v1061 = vsel %vm410, %v841, 0.0
      %1062 = vadd.xlane.f32.xlu0 %v1061
      %v1063 = vpop.xlane.xlu0 %1062
      %v1064 = vsel %vm410, %v842, 0.0
      %1065 = vadd.xlane.f32.xlu0 %v1064
      %v1066 = vpop.xlane.xlu0 %1065
      %v1067 = vsel %vm410, %v843, 0.0
      %1068 = vadd.xlane.f32.xlu0 %v1067
      %v1069 = vpop.xlane.xlu0 %1068
      %v1070 = vsel %vm410, %v844, 0.0
      %1071 = vadd.xlane.f32.xlu0 %v1070
      %v1072 = vpop.xlane.xlu0 %1071
      %v1073 = vsel %vm410, %v845, 0.0
      %1074 = vadd.xlane.f32.xlu0 %v1073
      %v1075 = vpop.xlane.xlu0 %1074
      %v1076 = vsel %vm410, %v846, 0.0
      %1077 = vadd.xlane.f32.xlu0 %v1076
      %v1078 = vpop.xlane.xlu0 %1077
      %v1079 = vsel %vm410, %v847, 0.0
      %1080 = vadd.xlane.f32.xlu0 %v1079
      %v1081 = vpop.xlane.xlu0 %1080
      %v1082 = vsel %vm410, %v848, 0.0
      %1083 = vadd.xlane.f32.xlu0 %v1082
      %v1084 = vpop.xlane.xlu0 %1083
      %v1085 = vsel %vm410, %v849, 0.0
      %1086 = vadd.xlane.f32.xlu0 %v1085
      %v1087 = vpop.xlane.xlu0 %1086
      %v1088 = vsel %vm410, %v850, 0.0
      %1089 = vadd.xlane.f32.xlu0 %v1088
      %v1090 = vpop.xlane.xlu0 %1089
      %v1091 = vsel %vm410, %v851, 0.0
      %1092 = vadd.xlane.f32.xlu0 %v1091
      %v1093 = vpop.xlane.xlu0 %1092
      %v1094 = vsel %vm410, %v852, 0.0
      %1095 = vadd.xlane.f32.xlu0 %v1094
      %v1096 = vpop.xlane.xlu0 %1095
      %v1097 = vsel %vm410, %v853, 0.0
      %1098 = vadd.xlane.f32.xlu0 %v1097
      %v1099 = vpop.xlane.xlu0 %1098
      %v1100 = vsel %vm410, %v854, 0.0
      %1101 = vadd.xlane.f32.xlu0 %v1100
      %v1102 = vpop.xlane.xlu0 %1101
      %v1103 = vsel %vm410, %v855, 0.0
      %1104 = vadd.xlane.f32.xlu0 %v1103
      %v1105 = vpop.xlane.xlu0 %1104
      %v1106 = vsel %vm410, %v856, 0.0
      %1107 = vadd.xlane.f32.xlu0 %v1106
      %v1108 = vpop.xlane.xlu0 %1107
      %v1109 = vsel %vm410, %v857, 0.0
      %1110 = vadd.xlane.f32.xlu0 %v1109
      %v1111 = vpop.xlane.xlu0 %1110
      %v1112 = vsel %vm410, %v858, 0.0
      %1113 = vadd.xlane.f32.xlu0 %v1112
      %v1114 = vpop.xlane.xlu0 %1113
      %v1115 = vsel %vm410, %v859, 0.0
      %1116 = vadd.xlane.f32.xlu0 %v1115
      %v1117 = vpop.xlane.xlu0 %1116
      %v1118 = vsel %vm410, %v860, 0.0
      %1119 = vadd.xlane.f32.xlu0 %v1118
      %v1120 = vpop.xlane.xlu0 %1119
      %v1121 = vsel %vm410, %v861, 0.0
      %1122 = vadd.xlane.f32.xlu0 %v1121
      %v1123 = vpop.xlane.xlu0 %1122
      %v1124 = vsel %vm410, %v862, 0.0
      %1125 = vadd.xlane.f32.xlu0 %v1124
      %v1126 = vpop.xlane.xlu0 %1125
      %v1127 = vsel %vm410, %v863, 0.0
      %1128 = vadd.xlane.f32.xlu0 %v1127
      %v1129 = vpop.xlane.xlu0 %1128
      %v1130 = vsel %vm410, %v864, 0.0
      %1131 = vadd.xlane.f32.xlu0 %v1130
      %v1132 = vpop.xlane.xlu0 %1131
      %v1133 = vsel %vm410, %v865, 0.0
      %1134 = vadd.xlane.f32.xlu0 %v1133
      %v1135 = vpop.xlane.xlu0 %1134
      %v1136 = vsel %vm410, %v866, 0.0
      %1137 = vadd.xlane.f32.xlu0 %v1136
      %v1138 = vpop.xlane.xlu0 %1137
      %v1139 = vsel %vm410, %v867, 0.0
      %1140 = vadd.xlane.f32.xlu0 %v1139
      %v1141 = vpop.xlane.xlu0 %1140
      %v1142 = vsel %vm410, %v868, 0.0
      %1143 = vadd.xlane.f32.xlu0 %v1142
      %v1144 = vpop.xlane.xlu0 %1143
      %v1145 = vsel %vm410, %v869, 0.0
      %1146 = vadd.xlane.f32.xlu0 %v1145
      %v1147 = vpop.xlane.xlu0 %1146
      %v1148 = vsel %vm410, %v870, 0.0
      %1149 = vadd.xlane.f32.xlu0 %v1148
      %v1150 = vpop.xlane.xlu0 %1149
      %v1151 = vsel %vm410, %v871, 0.0
      %1152 = vadd.xlane.f32.xlu0 %v1151
      %v1153 = vpop.xlane.xlu0 %1152
      %v1154 = vsel %vm410, %v872, 0.0
      %1155 = vadd.xlane.f32.xlu0 %v1154
      %v1156 = vpop.xlane.xlu0 %1155
      %v1157 = vsel %vm410, %v873, 0.0
      %1158 = vadd.xlane.f32.xlu0 %v1157
      %v1159 = vpop.xlane.xlu0 %1158
      %v1160 = vsel %vm410, %v874, 0.0
      %1161 = vadd.xlane.f32.xlu0 %v1160
      %v1162 = vpop.xlane.xlu0 %1161
      %v1163 = vsel %vm410, %v875, 0.0
      %1164 = vadd.xlane.f32.xlu0 %v1163
      %v1165 = vpop.xlane.xlu0 %1164
      %v1166 = vsel %vm410, %v876, 0.0
      %1167 = vadd.xlane.f32.xlu0 %v1166
      %v1168 = vpop.xlane.xlu0 %1167
      %v1169 = vsel %vm410, %v877, 0.0
      %1170 = vadd.xlane.f32.xlu0 %v1169
      %v1171 = vpop.xlane.xlu0 %1170
      %v1172 = vsel %vm410, %v878, 0.0
      %1173 = vadd.xlane.f32.xlu0 %v1172
      %v1174 = vpop.xlane.xlu0 %1173
      %v1175 = vsel %vm410, %v879, 0.0
      %1176 = vadd.xlane.f32.xlu0 %v1175
      %v1177 = vpop.xlane.xlu0 %1176
      %v1178 = vsel %vm410, %v880, 0.0
      %1179 = vadd.xlane.f32.xlu0 %v1178
      %v1180 = vpop.xlane.xlu0 %1179
      %v1181 = vsel %vm410, %v881, 0.0
      %1182 = vadd.xlane.f32.xlu0 %v1181
      %v1183 = vpop.xlane.xlu0 %1182
      %v1184 = vsel %vm410, %v882, 0.0
      %1185 = vadd.xlane.f32.xlu0 %v1184
      %v1186 = vpop.xlane.xlu0 %1185
      %v1187 = vsel %vm410, %v883, 0.0
      %1188 = vadd.xlane.f32.xlu0 %v1187
      %v1189 = vpop.xlane.xlu0 %1188
      %v1190 = vsel %vm410, %v884, 0.0
      %1191 = vadd.xlane.f32.xlu0 %v1190
      %v1192 = vpop.xlane.xlu0 %1191
      %v1193 = vsel %vm410, %v885, 0.0
      %1194 = vadd.xlane.f32.xlu0 %v1193
      %v1195 = vpop.xlane.xlu0 %1194
      %v1196 = vsel %vm410, %v886, 0.0
      %1197 = vadd.xlane.f32.xlu0 %v1196
      %v1198 = vpop.xlane.xlu0 %1197
      %v1199 = vsel %vm410, %v887, 0.0
      %1200 = vadd.xlane.f32.xlu0 %v1199
      %v1201 = vpop.xlane.xlu0 %1200
      %v1202 = vsel %vm410, %v888, 0.0
      %1203 = vadd.xlane.f32.xlu0 %v1202
      %v1204 = vpop.xlane.xlu0 %1203
      %v1205 = vsel %vm410, %v889, 0.0
      %1206 = vadd.xlane.f32.xlu0 %v1205
      %v1207 = vpop.xlane.xlu0 %1206
      %v1208 = vsel %vm410, %v890, 0.0
      %1209 = vadd.xlane.f32.xlu0 %v1208
      %v1210 = vpop.xlane.xlu0 %1209
      %v1211 = vsel %vm410, %v891, 0.0
      %1212 = vadd.xlane.f32.xlu0 %v1211
      %v1213 = vpop.xlane.xlu0 %1212
      %v1214 = vsel %vm410, %v892, 0.0
      %1215 = vadd.xlane.f32.xlu0 %v1214
      %v1216 = vpop.xlane.xlu0 %1215
      %v1217 = vsel %vm410, %v893, 0.0
      %1218 = vadd.xlane.f32.xlu0 %v1217
      %v1219 = vpop.xlane.xlu0 %1218
      %v1220 = vsel %vm410, %v894, 0.0
      %1221 = vadd.xlane.f32.xlu0 %v1220
      %v1222 = vpop.xlane.xlu0 %1221
      %v1223 = vsel %vm410, %v895, 0.0
      %1224 = vadd.xlane.f32.xlu0 %v1223
      %v1225 = vpop.xlane.xlu0 %1224
      %v1226 = vsel %vm410, %v896, 0.0
      %1227 = vadd.xlane.f32.xlu0 %v1226
      %v1228 = vpop.xlane.xlu0 %1227
      %v1229 = vsel %vm410, %v897, 0.0
      %1230 = vadd.xlane.f32.xlu0 %v1229
      %v1231 = vpop.xlane.xlu0 %1230
      %v1232 = vsel %vm410, %v898, 0.0
      %1233 = vadd.xlane.f32.xlu0 %v1232
      %v1234 = vpop.xlane.xlu0 %1233
      %v1235 = vsel %vm410, %v899, 0.0
      %1236 = vadd.xlane.f32.xlu0 %v1235
      %v1237 = vpop.xlane.xlu0 %1236
      %v1238 = vsel %vm410, %v900, 0.0
      %1239 = vadd.xlane.f32.xlu0 %v1238
      %v1240 = vpop.xlane.xlu0 %1239
      %v1241 = vsel %vm410, %v901, 0.0
      %1242 = vadd.xlane.f32.xlu0 %v1241
      %v1243 = vpop.xlane.xlu0 %1242
      %v1244 = vsel %vm410, %v902, 0.0
      %1245 = vadd.xlane.f32.xlu0 %v1244
      %v1246 = vpop.xlane.xlu0 %1245
      %v1247 = vsel %vm410, %v903, 0.0
      %1248 = vadd.xlane.f32.xlu0 %v1247
      %v1249 = vpop.xlane.xlu0 %1248
      %v1250 = vsel %vm410, %v904, 0.0
      %1251 = vadd.xlane.f32.xlu0 %v1250
      %v1252 = vpop.xlane.xlu0 %1251
      %v1253 = vsel %vm410, %v905, 0.0
      %1254 = vadd.xlane.f32.xlu0 %v1253
      %v1255 = vpop.xlane.xlu0 %1254
      %v1256 = vsel %vm410, %v906, 0.0
      %1257 = vadd.xlane.f32.xlu0 %v1256
      %v1258 = vpop.xlane.xlu0 %1257
      %v1259 = vsel %vm410, %v907, 0.0
      %1260 = vadd.xlane.f32.xlu0 %v1259
      %v1261 = vpop.xlane.xlu0 %1260
      %v1262 = vsel %vm410, %v908, 0.0
      %1263 = vadd.xlane.f32.xlu0 %v1262
      %v1264 = vpop.xlane.xlu0 %1263
      %v1265 = vsel %vm410, %v909, 0.0
      %1266 = vadd.xlane.f32.xlu0 %v1265
      %v1267 = vpop.xlane.xlu0 %1266
      %v1268 = vsel %vm410, %v910, 0.0
      %1269 = vadd.xlane.f32.xlu0 %v1268
      %v1270 = vpop.xlane.xlu0 %1269
      %v1271 = vsel %vm410, %v911, 0.0
      %1272 = vadd.xlane.f32.xlu0 %v1271
      %v1273 = vpop.xlane.xlu0 %1272
      %v1274 = vsel %vm410, %v912, 0.0
      %1275 = vadd.xlane.f32.xlu0 %v1274
      %v1276 = vpop.xlane.xlu0 %1275
      %v1277 = vsel %vm410, %v913, 0.0
      %1278 = vadd.xlane.f32.xlu0 %v1277
      %v1279 = vpop.xlane.xlu0 %1278
      %v1280 = vsel %vm410, %v914, 0.0
      %1281 = vadd.xlane.f32.xlu0 %v1280
      %v1282 = vpop.xlane.xlu0 %1281
      %v1283 = vsel %vm410, %v915, 0.0
      %1284 = vadd.xlane.f32.xlu0 %v1283
      %v1285 = vpop.xlane.xlu0 %1284
      %v1286 = vsel %vm410, %v916, 0.0
      %1287 = vadd.xlane.f32.xlu0 %v1286
      %v1288 = vpop.xlane.xlu0 %1287
      %v1289 = vsel %vm410, %v917, 0.0
      %1290 = vadd.xlane.f32.xlu0 %v1289
      %v1291 = vpop.xlane.xlu0 %1290
      %v1292 = vsel %vm410, %v918, 0.0
      %1293 = vadd.xlane.f32.xlu0 %v1292
      %v1294 = vpop.xlane.xlu0 %1293
      %v1295 = vsel %vm410, %v919, 0.0
      %1296 = vadd.xlane.f32.xlu0 %v1295
      %v1297 = vpop.xlane.xlu0 %1296
      %v1298 = vsel %vm410, %v920, 0.0
      %1299 = vadd.xlane.f32.xlu0 %v1298
      %v1300 = vpop.xlane.xlu0 %1299
      %v1301 = vsel %vm410, %v921, 0.0
      %1302 = vadd.xlane.f32.xlu0 %v1301
      %v1303 = vpop.xlane.xlu0 %1302
      %v1304 = vsel %vm410, %v922, 0.0
      %1305 = vadd.xlane.f32.xlu0 %v1304
      %v1306 = vpop.xlane.xlu0 %1305
      %v1307 = vmul.f32 %v413, %v413
      %v1308 = vmul.f32 %v416, %v416
      %v1309 = vmul.f32 %v419, %v419
      %v1310 = vmul.f32 %v422, %v422
      %v1311 = vmul.f32 %v425, %v425
      %v1312 = vmul.f32 %v428, %v428
      %v1313 = vmul.f32 %v431, %v431
      %v1314 = vmul.f32 %v434, %v434
      %v1315 = vmul.f32 %v437, %v437
      %v1316 = vmul.f32 %v440, %v440
      %v1317 = vmul.f32 %v443, %v443
      %v1318 = vmul.f32 %v446, %v446
      %v1319 = vmul.f32 %v449, %v449
      %v1320 = vmul.f32 %v452, %v452
      %v1321 = vmul.f32 %v455, %v455
      %v1322 = vmul.f32 %v458, %v458
      %v1323 = vmul.f32 %v461, %v461
      %v1324 = vmul.f32 %v464, %v464
      %v1325 = vmul.f32 %v467, %v467
      %v1326 = vmul.f32 %v470, %v470
      %v1327 = vmul.f32 %v473, %v473
      %v1328 = vmul.f32 %v476, %v476
      %v1329 = vmul.f32 %v479, %v479
      %v1330 = vmul.f32 %v482, %v482
      %v1331 = vmul.f32 %v485, %v485
      %v1332 = vmul.f32 %v488, %v488
      %v1333 = vmul.f32 %v491, %v491
      %v1334 = vmul.f32 %v494, %v494
      %v1335 = vmul.f32 %v497, %v497
      %v1336 = vmul.f32 %v500, %v500
      %v1337 = vmul.f32 %v503, %v503
      %v1338 = vmul.f32 %v506, %v506
      %v1339 = vmul.f32 %v509, %v509
      %v1340 = vmul.f32 %v512, %v512
      %v1341 = vmul.f32 %v515, %v515
      %v1342 = vmul.f32 %v518, %v518
      %v1343 = vmul.f32 %v521, %v521
      %v1344 = vmul.f32 %v524, %v524
      %v1345 = vmul.f32 %v527, %v527
      %v1346 = vmul.f32 %v530, %v530
      %v1347 = vmul.f32 %v533, %v533
      %v1348 = vmul.f32 %v536, %v536
      %v1349 = vmul.f32 %v539, %v539
      %v1350 = vmul.f32 %v542, %v542
      %v1351 = vmul.f32 %v545, %v545
      %v1352 = vmul.f32 %v548, %v548
      %v1353 = vmul.f32 %v551, %v551
      %v1354 = vmul.f32 %v554, %v554
      %v1355 = vmul.f32 %v557, %v557
      %v1356 = vmul.f32 %v560, %v560
      %v1357 = vmul.f32 %v563, %v563
      %v1358 = vmul.f32 %v566, %v566
      %v1359 = vmul.f32 %v569, %v569
      %v1360 = vmul.f32 %v572, %v572
      %v1361 = vmul.f32 %v575, %v575
      %v1362 = vmul.f32 %v578, %v578
      %v1363 = vmul.f32 %v581, %v581
      %v1364 = vmul.f32 %v584, %v584
      %v1365 = vmul.f32 %v587, %v587
      %v1366 = vmul.f32 %v590, %v590
      %v1367 = vmul.f32 %v593, %v593
      %v1368 = vmul.f32 %v596, %v596
      %v1369 = vmul.f32 %v599, %v599
      %v1370 = vmul.f32 %v602, %v602
      %v1371 = vmul.f32 %v605, %v605
      %v1372 = vmul.f32 %v608, %v608
      %v1373 = vmul.f32 %v611, %v611
      %v1374 = vmul.f32 %v614, %v614
      %v1375 = vmul.f32 %v617, %v617
      %v1376 = vmul.f32 %v620, %v620
      %v1377 = vmul.f32 %v623, %v623
      %v1378 = vmul.f32 %v626, %v626
      %v1379 = vmul.f32 %v629, %v629
      %v1380 = vmul.f32 %v632, %v632
      %v1381 = vmul.f32 %v635, %v635
      %v1382 = vmul.f32 %v638, %v638
      %v1383 = vmul.f32 %v641, %v641
      %v1384 = vmul.f32 %v644, %v644
      %v1385 = vmul.f32 %v647, %v647
      %v1386 = vmul.f32 %v650, %v650
      %v1387 = vmul.f32 %v653, %v653
      %v1388 = vmul.f32 %v656, %v656
      %v1389 = vmul.f32 %v659, %v659
      %v1390 = vmul.f32 %v662, %v662
      %v1391 = vmul.f32 %v665, %v665
      %v1392 = vmul.f32 %v668, %v668
      %v1393 = vmul.f32 %v671, %v671
      %v1394 = vmul.f32 %v674, %v674
      %v1395 = vmul.f32 %v677, %v677
      %v1396 = vmul.f32 %v680, %v680
      %v1397 = vmul.f32 %v683, %v683
      %v1398 = vmul.f32 %v686, %v686
      %v1399 = vmul.f32 %v689, %v689
      %v1400 = vmul.f32 %v692, %v692
      %v1401 = vmul.f32 %v695, %v695
      %v1402 = vmul.f32 %v698, %v698
      %v1403 = vmul.f32 %v701, %v701
      %v1404 = vmul.f32 %v704, %v704
      %v1405 = vmul.f32 %v707, %v707
      %v1406 = vmul.f32 %v710, %v710
      %v1407 = vmul.f32 %v713, %v713
      %v1408 = vmul.f32 %v716, %v716
      %v1409 = vmul.f32 %v719, %v719
      %v1410 = vmul.f32 %v722, %v722
      %v1411 = vmul.f32 %v725, %v725
      %v1412 = vmul.f32 %v728, %v728
      %v1413 = vmul.f32 %v731, %v731
      %v1414 = vmul.f32 %v734, %v734
      %v1415 = vmul.f32 %v737, %v737
      %v1416 = vmul.f32 %v740, %v740
      %v1417 = vmul.f32 %v743, %v743
      %v1418 = vmul.f32 %v746, %v746
      %v1419 = vmul.f32 %v749, %v749
      %v1420 = vmul.f32 %v752, %v752
      %v1421 = vmul.f32 %v755, %v755
      %v1422 = vmul.f32 %v758, %v758
      %v1423 = vmul.f32 %v761, %v761
      %v1424 = vmul.f32 %v764, %v764
      %v1425 = vmul.f32 %v767, %v767
      %v1426 = vmul.f32 %v770, %v770
      %v1427 = vmul.f32 %v773, %v773
      %v1428 = vmul.f32 %v776, %v776
      %v1429 = vmul.f32 %v779, %v779
      %v1430 = vmul.f32 %v782, %v782
      %v1431 = vmul.f32 %v785, %v785
      %v1432 = vmul.f32 %v788, %v788
      %v1433 = vmul.f32 %v791, %v791
      %v1434 = vmul.f32 %v794, %v794
      %v1435 = vsub.f32 %v925, %v1307
      %v1436 = vsub.f32 %v928, %v1308
      %v1437 = vsub.f32 %v931, %v1309
      %v1438 = vsub.f32 %v934, %v1310
      %v1439 = vsub.f32 %v937, %v1311
      %v1440 = vsub.f32 %v940, %v1312
      %v1441 = vsub.f32 %v943, %v1313
      %v1442 = vsub.f32 %v946, %v1314
      %v1443 = vsub.f32 %v949, %v1315
      %v1444 = vsub.f32 %v952, %v1316
      %v1445 = vsub.f32 %v955, %v1317
      %v1446 = vsub.f32 %v958, %v1318
      %v1447 = vsub.f32 %v961, %v1319
      %v1448 = vsub.f32 %v964, %v1320
      %v1449 = vsub.f32 %v967, %v1321
      %v1450 = vsub.f32 %v970, %v1322
      %v1451 = vsub.f32 %v973, %v1323
      %v1452 = vsub.f32 %v976, %v1324
      %v1453 = vsub.f32 %v979, %v1325
      %v1454 = vsub.f32 %v982, %v1326
      %v1455 = vsub.f32 %v985, %v1327
      %v1456 = vsub.f32 %v988, %v1328
      %v1457 = vsub.f32 %v991, %v1329
      %v1458 = vsub.f32 %v994, %v1330
      %v1459 = vsub.f32 %v997, %v1331
      %v1460 = vsub.f32 %v1000, %v1332
      %v1461 = vsub.f32 %v1003, %v1333
      %v1462 = vsub.f32 %v1006, %v1334
      %v1463 = vsub.f32 %v1009, %v1335
      %v1464 = vsub.f32 %v1012, %v1336
      %v1465 = vsub.f32 %v1015, %v1337
      %v1466 = vsub.f32 %v1018, %v1338
      %v1467 = vsub.f32 %v1021, %v1339
      %v1468 = vsub.f32 %v1024, %v1340
      %v1469 = vsub.f32 %v1027, %v1341
      %v1470 = vsub.f32 %v1030, %v1342
      %v1471 = vsub.f32 %v1033, %v1343
      %v1472 = vsub.f32 %v1036, %v1344
      %v1473 = vsub.f32 %v1039, %v1345
      %v1474 = vsub.f32 %v1042, %v1346
      %v1475 = vsub.f32 %v1045, %v1347
      %v1476 = vsub.f32 %v1048, %v1348
      %v1477 = vsub.f32 %v1051, %v1349
      %v1478 = vsub.f32 %v1054, %v1350
      %v1479 = vsub.f32 %v1057, %v1351
      %v1480 = vsub.f32 %v1060, %v1352
      %v1481 = vsub.f32 %v1063, %v1353
      %v1482 = vsub.f32 %v1066, %v1354
      %v1483 = vsub.f32 %v1069, %v1355
      %v1484 = vsub.f32 %v1072, %v1356
      %v1485 = vsub.f32 %v1075, %v1357
      %v1486 = vsub.f32 %v1078, %v1358
      %v1487 = vsub.f32 %v1081, %v1359
      %v1488 = vsub.f32 %v1084, %v1360
      %v1489 = vsub.f32 %v1087, %v1361
      %v1490 = vsub.f32 %v1090, %v1362
      %v1491 = vsub.f32 %v1093, %v1363
      %v1492 = vsub.f32 %v1096, %v1364
      %v1493 = vsub.f32 %v1099, %v1365
      %v1494 = vsub.f32 %v1102, %v1366
      %v1495 = vsub.f32 %v1105, %v1367
      %v1496 = vsub.f32 %v1108, %v1368
      %v1497 = vsub.f32 %v1111, %v1369
      %v1498 = vsub.f32 %v1114, %v1370
      %v1499 = vsub.f32 %v1117, %v1371
      %v1500 = vsub.f32 %v1120, %v1372
      %v1501 = vsub.f32 %v1123, %v1373
      %v1502 = vsub.f32 %v1126, %v1374
      %v1503 = vsub.f32 %v1129, %v1375
      %v1504 = vsub.f32 %v1132, %v1376
      %v1505 = vsub.f32 %v1135, %v1377
      %v1506 = vsub.f32 %v1138, %v1378
      %v1507 = vsub.f32 %v1141, %v1379
      %v1508 = vsub.f32 %v1144, %v1380
      %v1509 = vsub.f32 %v1147, %v1381
      %v1510 = vsub.f32 %v1150, %v1382
      %v1511 = vsub.f32 %v1153, %v1383
      %v1512 = vsub.f32 %v1156, %v1384
      %v1513 = vsub.f32 %v1159, %v1385
      %v1514 = vsub.f32 %v1162, %v1386
      %v1515 = vsub.f32 %v1165, %v1387
      %v1516 = vsub.f32 %v1168, %v1388
      %v1517 = vsub.f32 %v1171, %v1389
      %v1518 = vsub.f32 %v1174, %v1390
      %v1519 = vsub.f32 %v1177, %v1391
      %v1520 = vsub.f32 %v1180, %v1392
      %v1521 = vsub.f32 %v1183, %v1393
      %v1522 = vsub.f32 %v1186, %v1394
      %v1523 = vsub.f32 %v1189, %v1395
      %v1524 = vsub.f32 %v1192, %v1396
      %v1525 = vsub.f32 %v1195, %v1397
      %v1526 = vsub.f32 %v1198, %v1398
      %v1527 = vsub.f32 %v1201, %v1399
      %v1528 = vsub.f32 %v1204, %v1400
      %v1529 = vsub.f32 %v1207, %v1401
      %v1530 = vsub.f32 %v1210, %v1402
      %v1531 = vsub.f32 %v1213, %v1403
      %v1532 = vsub.f32 %v1216, %v1404
      %v1533 = vsub.f32 %v1219, %v1405
      %v1534 = vsub.f32 %v1222, %v1406
      %v1535 = vsub.f32 %v1225, %v1407
      %v1536 = vsub.f32 %v1228, %v1408
      %v1537 = vsub.f32 %v1231, %v1409
      %v1538 = vsub.f32 %v1234, %v1410
      %v1539 = vsub.f32 %v1237, %v1411
      %v1540 = vsub.f32 %v1240, %v1412
      %v1541 = vsub.f32 %v1243, %v1413
      %v1542 = vsub.f32 %v1246, %v1414
      %v1543 = vsub.f32 %v1249, %v1415
      %v1544 = vsub.f32 %v1252, %v1416
      %v1545 = vsub.f32 %v1255, %v1417
      %v1546 = vsub.f32 %v1258, %v1418
      %v1547 = vsub.f32 %v1261, %v1419
      %v1548 = vsub.f32 %v1264, %v1420
      %v1549 = vsub.f32 %v1267, %v1421
      %v1550 = vsub.f32 %v1270, %v1422
      %v1551 = vsub.f32 %v1273, %v1423
      %v1552 = vsub.f32 %v1276, %v1424
      %v1553 = vsub.f32 %v1279, %v1425
      %v1554 = vsub.f32 %v1282, %v1426
      %v1555 = vsub.f32 %v1285, %v1427
      %v1556 = vsub.f32 %v1288, %v1428
      %v1557 = vsub.f32 %v1291, %v1429
      %v1558 = vsub.f32 %v1294, %v1430
      %v1559 = vsub.f32 %v1297, %v1431
      %v1560 = vsub.f32 %v1300, %v1432
      %v1561 = vsub.f32 %v1303, %v1433
      %v1562 = vsub.f32 %v1306, %v1434
      %v1563 = vmax.f32 %v1435, 0.0
      %v1564 = vmax.f32 %v1436, 0.0
      %v1565 = vmax.f32 %v1437, 0.0
      %v1566 = vmax.f32 %v1438, 0.0
      %v1567 = vmax.f32 %v1439, 0.0
      %v1568 = vmax.f32 %v1440, 0.0
      %v1569 = vmax.f32 %v1441, 0.0
      %v1570 = vmax.f32 %v1442, 0.0
      %v1571 = vmax.f32 %v1443, 0.0
      %v1572 = vmax.f32 %v1444, 0.0
      %v1573 = vmax.f32 %v1445, 0.0
      %v1574 = vmax.f32 %v1446, 0.0
      %v1575 = vmax.f32 %v1447, 0.0
      %v1576 = vmax.f32 %v1448, 0.0
      %v1577 = vmax.f32 %v1449, 0.0
      %v1578 = vmax.f32 %v1450, 0.0
      %v1579 = vmax.f32 %v1451, 0.0
      %v1580 = vmax.f32 %v1452, 0.0
      %v1581 = vmax.f32 %v1453, 0.0
      %v1582 = vmax.f32 %v1454, 0.0
      %v1583 = vmax.f32 %v1455, 0.0
      %v1584 = vmax.f32 %v1456, 0.0
      %v1585 = vmax.f32 %v1457, 0.0
      %v1586 = vmax.f32 %v1458, 0.0
      %v1587 = vmax.f32 %v1459, 0.0
      %v1588 = vmax.f32 %v1460, 0.0
      %v1589 = vmax.f32 %v1461, 0.0
      %v1590 = vmax.f32 %v1462, 0.0
      %v1591 = vmax.f32 %v1463, 0.0
      %v1592 = vmax.f32 %v1464, 0.0
      %v1593 = vmax.f32 %v1465, 0.0
      %v1594 = vmax.f32 %v1466, 0.0
      %v1595 = vmax.f32 %v1467, 0.0
      %v1596 = vmax.f32 %v1468, 0.0
      %v1597 = vmax.f32 %v1469, 0.0
      %v1598 = vmax.f32 %v1470, 0.0
      %v1599 = vmax.f32 %v1471, 0.0
      %v1600 = vmax.f32 %v1472, 0.0
      %v1601 = vmax.f32 %v1473, 0.0
      %v1602 = vmax.f32 %v1474, 0.0
      %v1603 = vmax.f32 %v1475, 0.0
      %v1604 = vmax.f32 %v1476, 0.0
      %v1605 = vmax.f32 %v1477, 0.0
      %v1606 = vmax.f32 %v1478, 0.0
      %v1607 = vmax.f32 %v1479, 0.0
      %v1608 = vmax.f32 %v1480, 0.0
      %v1609 = vmax.f32 %v1481, 0.0
      %v1610 = vmax.f32 %v1482, 0.0
      %v1611 = vmax.f32 %v1483, 0.0
      %v1612 = vmax.f32 %v1484, 0.0
      %v1613 = vmax.f32 %v1485, 0.0
      %v1614 = vmax.f32 %v1486, 0.0
      %v1615 = vmax.f32 %v1487, 0.0
      %v1616 = vmax.f32 %v1488, 0.0
      %v1617 = vmax.f32 %v1489, 0.0
      %v1618 = vmax.f32 %v1490, 0.0
      %v1619 = vmax.f32 %v1491, 0.0
      %v1620 = vmax.f32 %v1492, 0.0
      %v1621 = vmax.f32 %v1493, 0.0
      %v1622 = vmax.f32 %v1494, 0.0
      %v1623 = vmax.f32 %v1495, 0.0
      %v1624 = vmax.f32 %v1496, 0.0
      %v1625 = vmax.f32 %v1497, 0.0
      %v1626 = vmax.f32 %v1498, 0.0
      %v1627 = vmax.f32 %v1499, 0.0
      %v1628 = vmax.f32 %v1500, 0.0
      %v1629 = vmax.f32 %v1501, 0.0
      %v1630 = vmax.f32 %v1502, 0.0
      %v1631 = vmax.f32 %v1503, 0.0
      %v1632 = vmax.f32 %v1504, 0.0
      %v1633 = vmax.f32 %v1505, 0.0
      %v1634 = vmax.f32 %v1506, 0.0
      %v1635 = vmax.f32 %v1507, 0.0
      %v1636 = vmax.f32 %v1508, 0.0
      %v1637 = vmax.f32 %v1509, 0.0
      %v1638 = vmax.f32 %v1510, 0.0
      %v1639 = vmax.f32 %v1511, 0.0
      %v1640 = vmax.f32 %v1512, 0.0
      %v1641 = vmax.f32 %v1513, 0.0
      %v1642 = vmax.f32 %v1514, 0.0
      %v1643 = vmax.f32 %v1515, 0.0
      %v1644 = vmax.f32 %v1516, 0.0
      %v1645 = vmax.f32 %v1517, 0.0
      %v1646 = vmax.f32 %v1518, 0.0
      %v1647 = vmax.f32 %v1519, 0.0
      %v1648 = vmax.f32 %v1520, 0.0
      %v1649 = vmax.f32 %v1521, 0.0
      %v1650 = vmax.f32 %v1522, 0.0
      %v1651 = vmax.f32 %v1523, 0.0
      %v1652 = vmax.f32 %v1524, 0.0
      %v1653 = vmax.f32 %v1525, 0.0
      %v1654 = vmax.f32 %v1526, 0.0
      %v1655 = vmax.f32 %v1527, 0.0
      %v1656 = vmax.f32 %v1528, 0.0
      %v1657 = vmax.f32 %v1529, 0.0
      %v1658 = vmax.f32 %v1530, 0.0
      %v1659 = vmax.f32 %v1531, 0.0
      %v1660 = vmax.f32 %v1532, 0.0
      %v1661 = vmax.f32 %v1533, 0.0
      %v1662 = vmax.f32 %v1534, 0.0
      %v1663 = vmax.f32 %v1535, 0.0
      %v1664 = vmax.f32 %v1536, 0.0
      %v1665 = vmax.f32 %v1537, 0.0
      %v1666 = vmax.f32 %v1538, 0.0
      %v1667 = vmax.f32 %v1539, 0.0
      %v1668 = vmax.f32 %v1540, 0.0
      %v1669 = vmax.f32 %v1541, 0.0
      %v1670 = vmax.f32 %v1542, 0.0
      %v1671 = vmax.f32 %v1543, 0.0
      %v1672 = vmax.f32 %v1544, 0.0
      %v1673 = vmax.f32 %v1545, 0.0
      %v1674 = vmax.f32 %v1546, 0.0
      %v1675 = vmax.f32 %v1547, 0.0
      %v1676 = vmax.f32 %v1548, 0.0
      %v1677 = vmax.f32 %v1549, 0.0
      %v1678 = vmax.f32 %v1550, 0.0
      %v1679 = vmax.f32 %v1551, 0.0
      %v1680 = vmax.f32 %v1552, 0.0
      %v1681 = vmax.f32 %v1553, 0.0
      %v1682 = vmax.f32 %v1554, 0.0
      %v1683 = vmax.f32 %v1555, 0.0
      %v1684 = vmax.f32 %v1556, 0.0
      %v1685 = vmax.f32 %v1557, 0.0
      %v1686 = vmax.f32 %v1558, 0.0
      %v1687 = vmax.f32 %v1559, 0.0
      %v1688 = vmax.f32 %v1560, 0.0
      %v1689 = vmax.f32 %v1561, 0.0
      %v1690 = vmax.f32 %v1562, 0.0
      %v1691 = vrsqrt.pop %v1563
      %v1692 = vmul.f32 %v1563, %v1691
      %vm1693 = vcmp.eq.f32.partialorder %v1563, inf
      %v1694 = vsel %vm1693, %v1563, %v1692
      %vm1695 = vcmp.eq.f32.partialorder %v1563, 0.0
      %v1696 = vand.u32 %v1563, 2147483648
      %v1697 = vsel %vm1695, %v1696, %v1694
      %v1698 = vrsqrt.pop %v1564
      %v1699 = vmul.f32 %v1564, %v1698
      %vm1700 = vcmp.eq.f32.partialorder %v1564, inf
      %v1701 = vsel %vm1700, %v1564, %v1699
      %vm1702 = vcmp.eq.f32.partialorder %v1564, 0.0
      %v1703 = vand.u32 %v1564, 2147483648
      %v1704 = vsel %vm1702, %v1703, %v1701
      %v1705 = vrsqrt.pop %v1565
      %v1706 = vmul.f32 %v1565, %v1705
      %vm1707 = vcmp.eq.f32.partialorder %v1565, inf
      %v1708 = vsel %vm1707, %v1565, %v1706
      %vm1709 = vcmp.eq.f32.partialorder %v1565, 0.0
      %v1710 = vand.u32 %v1565, 2147483648
      %v1711 = vsel %vm1709, %v1710, %v1708
      %v1712 = vrsqrt.pop %v1566
      %v1713 = vmul.f32 %v1566, %v1712
      %vm1714 = vcmp.eq.f32.partialorder %v1566, inf
      %v1715 = vsel %vm1714, %v1566, %v1713
      %vm1716 = vcmp.eq.f32.partialorder %v1566, 0.0
      %v1717 = vand.u32 %v1566, 2147483648
      %v1718 = vsel %vm1716, %v1717, %v1715
      %v1719 = vrsqrt.pop %v1567
      %v1720 = vmul.f32 %v1567, %v1719
      %vm1721 = vcmp.eq.f32.partialorder %v1567, inf
      %v1722 = vsel %vm1721, %v1567, %v1720
      %vm1723 = vcmp.eq.f32.partialorder %v1567, 0.0
      %v1724 = vand.u32 %v1567, 2147483648
      %v1725 = vsel %vm1723, %v1724, %v1722
      %v1726 = vrsqrt.pop %v1568
      %v1727 = vmul.f32 %v1568, %v1726
      %vm1728 = vcmp.eq.f32.partialorder %v1568, inf
      %v1729 = vsel %vm1728, %v1568, %v1727
      %vm1730 = vcmp.eq.f32.partialorder %v1568, 0.0
      %v1731 = vand.u32 %v1568, 2147483648
      %v1732 = vsel %vm1730, %v1731, %v1729
      %v1733 = vrsqrt.pop %v1569
      %v1734 = vmul.f32 %v1569, %v1733
      %vm1735 = vcmp.eq.f32.partialorder %v1569, inf
      %v1736 = vsel %vm1735, %v1569, %v1734
      %vm1737 = vcmp.eq.f32.partialorder %v1569, 0.0
      %v1738 = vand.u32 %v1569, 2147483648
      %v1739 = vsel %vm1737, %v1738, %v1736
      %v1740 = vrsqrt.pop %v1570
      %v1741 = vmul.f32 %v1570, %v1740
      %vm1742 = vcmp.eq.f32.partialorder %v1570, inf
      %v1743 = vsel %vm1742, %v1570, %v1741
      %vm1744 = vcmp.eq.f32.partialorder %v1570, 0.0
      %v1745 = vand.u32 %v1570, 2147483648
      %v1746 = vsel %vm1744, %v1745, %v1743
      %v1747 = vrsqrt.pop %v1571
      %v1748 = vmul.f32 %v1571, %v1747
      %vm1749 = vcmp.eq.f32.partialorder %v1571, inf
      %v1750 = vsel %vm1749, %v1571, %v1748
      %vm1751 = vcmp.eq.f32.partialorder %v1571, 0.0
      %v1752 = vand.u32 %v1571, 2147483648
      %v1753 = vsel %vm1751, %v1752, %v1750
      %v1754 = vrsqrt.pop %v1572
      %v1755 = vmul.f32 %v1572, %v1754
      %vm1756 = vcmp.eq.f32.partialorder %v1572, inf
      %v1757 = vsel %vm1756, %v1572, %v1755
      %vm1758 = vcmp.eq.f32.partialorder %v1572, 0.0
      %v1759 = vand.u32 %v1572, 2147483648
      %v1760 = vsel %vm1758, %v1759, %v1757
      %v1761 = vrsqrt.pop %v1573
      %v1762 = vmul.f32 %v1573, %v1761
      %vm1763 = vcmp.eq.f32.partialorder %v1573, inf
      %v1764 = vsel %vm1763, %v1573, %v1762
      %vm1765 = vcmp.eq.f32.partialorder %v1573, 0.0
      %v1766 = vand.u32 %v1573, 2147483648
      %v1767 = vsel %vm1765, %v1766, %v1764
      %v1768 = vrsqrt.pop %v1574
      %v1769 = vmul.f32 %v1574, %v1768
      %vm1770 = vcmp.eq.f32.partialorder %v1574, inf
      %v1771 = vsel %vm1770, %v1574, %v1769
      %vm1772 = vcmp.eq.f32.partialorder %v1574, 0.0
      %v1773 = vand.u32 %v1574, 2147483648
      %v1774 = vsel %vm1772, %v1773, %v1771
      %v1775 = vrsqrt.pop %v1575
      %v1776 = vmul.f32 %v1575, %v1775
      %vm1777 = vcmp.eq.f32.partialorder %v1575, inf
      %v1778 = vsel %vm1777, %v1575, %v1776
      %vm1779 = vcmp.eq.f32.partialorder %v1575, 0.0
      %v1780 = vand.u32 %v1575, 2147483648
      %v1781 = vsel %vm1779, %v1780, %v1778
      %v1782 = vrsqrt.pop %v1576
      %v1783 = vmul.f32 %v1576, %v1782
      %vm1784 = vcmp.eq.f32.partialorder %v1576, inf
      %v1785 = vsel %vm1784, %v1576, %v1783
      %vm1786 = vcmp.eq.f32.partialorder %v1576, 0.0
      %v1787 = vand.u32 %v1576, 2147483648
      %v1788 = vsel %vm1786, %v1787, %v1785
      %v1789 = vrsqrt.pop %v1577
      %v1790 = vmul.f32 %v1577, %v1789
      %vm1791 = vcmp.eq.f32.partialorder %v1577, inf
      %v1792 = vsel %vm1791, %v1577, %v1790
      %vm1793 = vcmp.eq.f32.partialorder %v1577, 0.0
      %v1794 = vand.u32 %v1577, 2147483648
      %v1795 = vsel %vm1793, %v1794, %v1792
      %v1796 = vrsqrt.pop %v1578
      %v1797 = vmul.f32 %v1578, %v1796
      %vm1798 = vcmp.eq.f32.partialorder %v1578, inf
      %v1799 = vsel %vm1798, %v1578, %v1797
      %vm1800 = vcmp.eq.f32.partialorder %v1578, 0.0
      %v1801 = vand.u32 %v1578, 2147483648
      %v1802 = vsel %vm1800, %v1801, %v1799
      %v1803 = vrsqrt.pop %v1579
      %v1804 = vmul.f32 %v1579, %v1803
      %vm1805 = vcmp.eq.f32.partialorder %v1579, inf
      %v1806 = vsel %vm1805, %v1579, %v1804
      %vm1807 = vcmp.eq.f32.partialorder %v1579, 0.0
      %v1808 = vand.u32 %v1579, 2147483648
      %v1809 = vsel %vm1807, %v1808, %v1806
      %v1810 = vrsqrt.pop %v1580
      %v1811 = vmul.f32 %v1580, %v1810
      %vm1812 = vcmp.eq.f32.partialorder %v1580, inf
      %v1813 = vsel %vm1812, %v1580, %v1811
      %vm1814 = vcmp.eq.f32.partialorder %v1580, 0.0
      %v1815 = vand.u32 %v1580, 2147483648
      %v1816 = vsel %vm1814, %v1815, %v1813
      %v1817 = vrsqrt.pop %v1581
      %v1818 = vmul.f32 %v1581, %v1817
      %vm1819 = vcmp.eq.f32.partialorder %v1581, inf
      %v1820 = vsel %vm1819, %v1581, %v1818
      %vm1821 = vcmp.eq.f32.partialorder %v1581, 0.0
      %v1822 = vand.u32 %v1581, 2147483648
      %v1823 = vsel %vm1821, %v1822, %v1820
      %v1824 = vrsqrt.pop %v1582
      %v1825 = vmul.f32 %v1582, %v1824
      %vm1826 = vcmp.eq.f32.partialorder %v1582, inf
      %v1827 = vsel %vm1826, %v1582, %v1825
      %vm1828 = vcmp.eq.f32.partialorder %v1582, 0.0
      %v1829 = vand.u32 %v1582, 2147483648
      %v1830 = vsel %vm1828, %v1829, %v1827
      %v1831 = vrsqrt.pop %v1583
      %v1832 = vmul.f32 %v1583, %v1831
      %vm1833 = vcmp.eq.f32.partialorder %v1583, inf
      %v1834 = vsel %vm1833, %v1583, %v1832
      %vm1835 = vcmp.eq.f32.partialorder %v1583, 0.0
      %v1836 = vand.u32 %v1583, 2147483648
      %v1837 = vsel %vm1835, %v1836, %v1834
      %v1838 = vrsqrt.pop %v1584
      %v1839 = vmul.f32 %v1584, %v1838
      %vm1840 = vcmp.eq.f32.partialorder %v1584, inf
      %v1841 = vsel %vm1840, %v1584, %v1839
      %vm1842 = vcmp.eq.f32.partialorder %v1584, 0.0
      %v1843 = vand.u32 %v1584, 2147483648
      %v1844 = vsel %vm1842, %v1843, %v1841
      %v1845 = vrsqrt.pop %v1585
      %v1846 = vmul.f32 %v1585, %v1845
      %vm1847 = vcmp.eq.f32.partialorder %v1585, inf
      %v1848 = vsel %vm1847, %v1585, %v1846
      %vm1849 = vcmp.eq.f32.partialorder %v1585, 0.0
      %v1850 = vand.u32 %v1585, 2147483648
      %v1851 = vsel %vm1849, %v1850, %v1848
      %v1852 = vrsqrt.pop %v1586
      %v1853 = vmul.f32 %v1586, %v1852
      %vm1854 = vcmp.eq.f32.partialorder %v1586, inf
      %v1855 = vsel %vm1854, %v1586, %v1853
      %vm1856 = vcmp.eq.f32.partialorder %v1586, 0.0
      %v1857 = vand.u32 %v1586, 2147483648
      %v1858 = vsel %vm1856, %v1857, %v1855
      %v1859 = vrsqrt.pop %v1587
      %v1860 = vmul.f32 %v1587, %v1859
      %vm1861 = vcmp.eq.f32.partialorder %v1587, inf
      %v1862 = vsel %vm1861, %v1587, %v1860
      %vm1863 = vcmp.eq.f32.partialorder %v1587, 0.0
      %v1864 = vand.u32 %v1587, 2147483648
      %v1865 = vsel %vm1863, %v1864, %v1862
      %v1866 = vrsqrt.pop %v1588
      %v1867 = vmul.f32 %v1588, %v1866
      %vm1868 = vcmp.eq.f32.partialorder %v1588, inf
      %v1869 = vsel %vm1868, %v1588, %v1867
      %vm1870 = vcmp.eq.f32.partialorder %v1588, 0.0
      %v1871 = vand.u32 %v1588, 2147483648
      %v1872 = vsel %vm1870, %v1871, %v1869
      %v1873 = vrsqrt.pop %v1589
      %v1874 = vmul.f32 %v1589, %v1873
      %vm1875 = vcmp.eq.f32.partialorder %v1589, inf
      %v1876 = vsel %vm1875, %v1589, %v1874
      %vm1877 = vcmp.eq.f32.partialorder %v1589, 0.0
      %v1878 = vand.u32 %v1589, 2147483648
      %v1879 = vsel %vm1877, %v1878, %v1876
      %v1880 = vrsqrt.pop %v1590
      %v1881 = vmul.f32 %v1590, %v1880
      %vm1882 = vcmp.eq.f32.partialorder %v1590, inf
      %v1883 = vsel %vm1882, %v1590, %v1881
      %vm1884 = vcmp.eq.f32.partialorder %v1590, 0.0
      %v1885 = vand.u32 %v1590, 2147483648
      %v1886 = vsel %vm1884, %v1885, %v1883
      %v1887 = vrsqrt.pop %v1591
      %v1888 = vmul.f32 %v1591, %v1887
      %vm1889 = vcmp.eq.f32.partialorder %v1591, inf
      %v1890 = vsel %vm1889, %v1591, %v1888
      %vm1891 = vcmp.eq.f32.partialorder %v1591, 0.0
      %v1892 = vand.u32 %v1591, 2147483648
      %v1893 = vsel %vm1891, %v1892, %v1890
      %v1894 = vrsqrt.pop %v1592
      %v1895 = vmul.f32 %v1592, %v1894
      %vm1896 = vcmp.eq.f32.partialorder %v1592, inf
      %v1897 = vsel %vm1896, %v1592, %v1895
      %vm1898 = vcmp.eq.f32.partialorder %v1592, 0.0
      %v1899 = vand.u32 %v1592, 2147483648
      %v1900 = vsel %vm1898, %v1899, %v1897
      %v1901 = vrsqrt.pop %v1593
      %v1902 = vmul.f32 %v1593, %v1901
      %vm1903 = vcmp.eq.f32.partialorder %v1593, inf
      %v1904 = vsel %vm1903, %v1593, %v1902
      %vm1905 = vcmp.eq.f32.partialorder %v1593, 0.0
      %v1906 = vand.u32 %v1593, 2147483648
      %v1907 = vsel %vm1905, %v1906, %v1904
      %v1908 = vrsqrt.pop %v1594
      %v1909 = vmul.f32 %v1594, %v1908
      %vm1910 = vcmp.eq.f32.partialorder %v1594, inf
      %v1911 = vsel %vm1910, %v1594, %v1909
      %vm1912 = vcmp.eq.f32.partialorder %v1594, 0.0
      %v1913 = vand.u32 %v1594, 2147483648
      %v1914 = vsel %vm1912, %v1913, %v1911
      %v1915 = vrsqrt.pop %v1595
      %v1916 = vmul.f32 %v1595, %v1915
      %vm1917 = vcmp.eq.f32.partialorder %v1595, inf
      %v1918 = vsel %vm1917, %v1595, %v1916
      %vm1919 = vcmp.eq.f32.partialorder %v1595, 0.0
      %v1920 = vand.u32 %v1595, 2147483648
      %v1921 = vsel %vm1919, %v1920, %v1918
      %v1922 = vrsqrt.pop %v1596
      %v1923 = vmul.f32 %v1596, %v1922
      %vm1924 = vcmp.eq.f32.partialorder %v1596, inf
      %v1925 = vsel %vm1924, %v1596, %v1923
      %vm1926 = vcmp.eq.f32.partialorder %v1596, 0.0
      %v1927 = vand.u32 %v1596, 2147483648
      %v1928 = vsel %vm1926, %v1927, %v1925
      %v1929 = vrsqrt.pop %v1597
      %v1930 = vmul.f32 %v1597, %v1929
      %vm1931 = vcmp.eq.f32.partialorder %v1597, inf
      %v1932 = vsel %vm1931, %v1597, %v1930
      %vm1933 = vcmp.eq.f32.partialorder %v1597, 0.0
      %v1934 = vand.u32 %v1597, 2147483648
      %v1935 = vsel %vm1933, %v1934, %v1932
      %v1936 = vrsqrt.pop %v1598
      %v1937 = vmul.f32 %v1598, %v1936
      %vm1938 = vcmp.eq.f32.partialorder %v1598, inf
      %v1939 = vsel %vm1938, %v1598, %v1937
      %vm1940 = vcmp.eq.f32.partialorder %v1598, 0.0
      %v1941 = vand.u32 %v1598, 2147483648
      %v1942 = vsel %vm1940, %v1941, %v1939
      %v1943 = vrsqrt.pop %v1599
      %v1944 = vmul.f32 %v1599, %v1943
      %vm1945 = vcmp.eq.f32.partialorder %v1599, inf
      %v1946 = vsel %vm1945, %v1599, %v1944
      %vm1947 = vcmp.eq.f32.partialorder %v1599, 0.0
      %v1948 = vand.u32 %v1599, 2147483648
      %v1949 = vsel %vm1947, %v1948, %v1946
      %v1950 = vrsqrt.pop %v1600
      %v1951 = vmul.f32 %v1600, %v1950
      %vm1952 = vcmp.eq.f32.partialorder %v1600, inf
      %v1953 = vsel %vm1952, %v1600, %v1951
      %vm1954 = vcmp.eq.f32.partialorder %v1600, 0.0
      %v1955 = vand.u32 %v1600, 2147483648
      %v1956 = vsel %vm1954, %v1955, %v1953
      %v1957 = vrsqrt.pop %v1601
      %v1958 = vmul.f32 %v1601, %v1957
      %vm1959 = vcmp.eq.f32.partialorder %v1601, inf
      %v1960 = vsel %vm1959, %v1601, %v1958
      %vm1961 = vcmp.eq.f32.partialorder %v1601, 0.0
      %v1962 = vand.u32 %v1601, 2147483648
      %v1963 = vsel %vm1961, %v1962, %v1960
      %v1964 = vrsqrt.pop %v1602
      %v1965 = vmul.f32 %v1602, %v1964
      %vm1966 = vcmp.eq.f32.partialorder %v1602, inf
      %v1967 = vsel %vm1966, %v1602, %v1965
      %vm1968 = vcmp.eq.f32.partialorder %v1602, 0.0
      %v1969 = vand.u32 %v1602, 2147483648
      %v1970 = vsel %vm1968, %v1969, %v1967
      %v1971 = vrsqrt.pop %v1603
      %v1972 = vmul.f32 %v1603, %v1971
      %vm1973 = vcmp.eq.f32.partialorder %v1603, inf
      %v1974 = vsel %vm1973, %v1603, %v1972
      %vm1975 = vcmp.eq.f32.partialorder %v1603, 0.0
      %v1976 = vand.u32 %v1603, 2147483648
      %v1977 = vsel %vm1975, %v1976, %v1974
      %v1978 = vrsqrt.pop %v1604
      %v1979 = vmul.f32 %v1604, %v1978
      %vm1980 = vcmp.eq.f32.partialorder %v1604, inf
      %v1981 = vsel %vm1980, %v1604, %v1979
      %vm1982 = vcmp.eq.f32.partialorder %v1604, 0.0
      %v1983 = vand.u32 %v1604, 2147483648
      %v1984 = vsel %vm1982, %v1983, %v1981
      %v1985 = vrsqrt.pop %v1605
      %v1986 = vmul.f32 %v1605, %v1985
      %vm1987 = vcmp.eq.f32.partialorder %v1605, inf
      %v1988 = vsel %vm1987, %v1605, %v1986
      %vm1989 = vcmp.eq.f32.partialorder %v1605, 0.0
      %v1990 = vand.u32 %v1605, 2147483648
      %v1991 = vsel %vm1989, %v1990, %v1988
      %v1992 = vrsqrt.pop %v1606
      %v1993 = vmul.f32 %v1606, %v1992
      %vm1994 = vcmp.eq.f32.partialorder %v1606, inf
      %v1995 = vsel %vm1994, %v1606, %v1993
      %vm1996 = vcmp.eq.f32.partialorder %v1606, 0.0
      %v1997 = vand.u32 %v1606, 2147483648
      %v1998 = vsel %vm1996, %v1997, %v1995
      %v1999 = vrsqrt.pop %v1607
      %v2000 = vmul.f32 %v1607, %v1999
      %vm2001 = vcmp.eq.f32.partialorder %v1607, inf
      %v2002 = vsel %vm2001, %v1607, %v2000
      %vm2003 = vcmp.eq.f32.partialorder %v1607, 0.0
      %v2004 = vand.u32 %v1607, 2147483648
      %v2005 = vsel %vm2003, %v2004, %v2002
      %v2006 = vrsqrt.pop %v1608
      %v2007 = vmul.f32 %v1608, %v2006
      %vm2008 = vcmp.eq.f32.partialorder %v1608, inf
      %v2009 = vsel %vm2008, %v1608, %v2007
      %vm2010 = vcmp.eq.f32.partialorder %v1608, 0.0
      %v2011 = vand.u32 %v1608, 2147483648
      %v2012 = vsel %vm2010, %v2011, %v2009
      %v2013 = vrsqrt.pop %v1609
      %v2014 = vmul.f32 %v1609, %v2013
      %vm2015 = vcmp.eq.f32.partialorder %v1609, inf
      %v2016 = vsel %vm2015, %v1609, %v2014
      %vm2017 = vcmp.eq.f32.partialorder %v1609, 0.0
      %v2018 = vand.u32 %v1609, 2147483648
      %v2019 = vsel %vm2017, %v2018, %v2016
      %v2020 = vrsqrt.pop %v1610
      %v2021 = vmul.f32 %v1610, %v2020
      %vm2022 = vcmp.eq.f32.partialorder %v1610, inf
      %v2023 = vsel %vm2022, %v1610, %v2021
      %vm2024 = vcmp.eq.f32.partialorder %v1610, 0.0
      %v2025 = vand.u32 %v1610, 2147483648
      %v2026 = vsel %vm2024, %v2025, %v2023
      %v2027 = vrsqrt.pop %v1611
      %v2028 = vmul.f32 %v1611, %v2027
      %vm2029 = vcmp.eq.f32.partialorder %v1611, inf
      %v2030 = vsel %vm2029, %v1611, %v2028
      %vm2031 = vcmp.eq.f32.partialorder %v1611, 0.0
      %v2032 = vand.u32 %v1611, 2147483648
      %v2033 = vsel %vm2031, %v2032, %v2030
      %v2034 = vrsqrt.pop %v1612
      %v2035 = vmul.f32 %v1612, %v2034
      %vm2036 = vcmp.eq.f32.partialorder %v1612, inf
      %v2037 = vsel %vm2036, %v1612, %v2035
      %vm2038 = vcmp.eq.f32.partialorder %v1612, 0.0
      %v2039 = vand.u32 %v1612, 2147483648
      %v2040 = vsel %vm2038, %v2039, %v2037
      %v2041 = vrsqrt.pop %v1613
      %v2042 = vmul.f32 %v1613, %v2041
      %vm2043 = vcmp.eq.f32.partialorder %v1613, inf
      %v2044 = vsel %vm2043, %v1613, %v2042
      %vm2045 = vcmp.eq.f32.partialorder %v1613, 0.0
      %v2046 = vand.u32 %v1613, 2147483648
      %v2047 = vsel %vm2045, %v2046, %v2044
      %v2048 = vrsqrt.pop %v1614
      %v2049 = vmul.f32 %v1614, %v2048
      %vm2050 = vcmp.eq.f32.partialorder %v1614, inf
      %v2051 = vsel %vm2050, %v1614, %v2049
      %vm2052 = vcmp.eq.f32.partialorder %v1614, 0.0
      %v2053 = vand.u32 %v1614, 2147483648
      %v2054 = vsel %vm2052, %v2053, %v2051
      %v2055 = vrsqrt.pop %v1615
      %v2056 = vmul.f32 %v1615, %v2055
      %vm2057 = vcmp.eq.f32.partialorder %v1615, inf
      %v2058 = vsel %vm2057, %v1615, %v2056
      %vm2059 = vcmp.eq.f32.partialorder %v1615, 0.0
      %v2060 = vand.u32 %v1615, 2147483648
      %v2061 = vsel %vm2059, %v2060, %v2058
      %v2062 = vrsqrt.pop %v1616
      %v2063 = vmul.f32 %v1616, %v2062
      %vm2064 = vcmp.eq.f32.partialorder %v1616, inf
      %v2065 = vsel %vm2064, %v1616, %v2063
      %vm2066 = vcmp.eq.f32.partialorder %v1616, 0.0
      %v2067 = vand.u32 %v1616, 2147483648
      %v2068 = vsel %vm2066, %v2067, %v2065
      %v2069 = vrsqrt.pop %v1617
      %v2070 = vmul.f32 %v1617, %v2069
      %vm2071 = vcmp.eq.f32.partialorder %v1617, inf
      %v2072 = vsel %vm2071, %v1617, %v2070
      %vm2073 = vcmp.eq.f32.partialorder %v1617, 0.0
      %v2074 = vand.u32 %v1617, 2147483648
      %v2075 = vsel %vm2073, %v2074, %v2072
      %v2076 = vrsqrt.pop %v1618
      %v2077 = vmul.f32 %v1618, %v2076
      %vm2078 = vcmp.eq.f32.partialorder %v1618, inf
      %v2079 = vsel %vm2078, %v1618, %v2077
      %vm2080 = vcmp.eq.f32.partialorder %v1618, 0.0
      %v2081 = vand.u32 %v1618, 2147483648
      %v2082 = vsel %vm2080, %v2081, %v2079
      %v2083 = vrsqrt.pop %v1619
      %v2084 = vmul.f32 %v1619, %v2083
      %vm2085 = vcmp.eq.f32.partialorder %v1619, inf
      %v2086 = vsel %vm2085, %v1619, %v2084
      %vm2087 = vcmp.eq.f32.partialorder %v1619, 0.0
      %v2088 = vand.u32 %v1619, 2147483648
      %v2089 = vsel %vm2087, %v2088, %v2086
      %v2090 = vrsqrt.pop %v1620
      %v2091 = vmul.f32 %v1620, %v2090
      %vm2092 = vcmp.eq.f32.partialorder %v1620, inf
      %v2093 = vsel %vm2092, %v1620, %v2091
      %vm2094 = vcmp.eq.f32.partialorder %v1620, 0.0
      %v2095 = vand.u32 %v1620, 2147483648
      %v2096 = vsel %vm2094, %v2095, %v2093
      %v2097 = vrsqrt.pop %v1621
      %v2098 = vmul.f32 %v1621, %v2097
      %vm2099 = vcmp.eq.f32.partialorder %v1621, inf
      %v2100 = vsel %vm2099, %v1621, %v2098
      %vm2101 = vcmp.eq.f32.partialorder %v1621, 0.0
      %v2102 = vand.u32 %v1621, 2147483648
      %v2103 = vsel %vm2101, %v2102, %v2100
      %v2104 = vrsqrt.pop %v1622
      %v2105 = vmul.f32 %v1622, %v2104
      %vm2106 = vcmp.eq.f32.partialorder %v1622, inf
      %v2107 = vsel %vm2106, %v1622, %v2105
      %vm2108 = vcmp.eq.f32.partialorder %v1622, 0.0
      %v2109 = vand.u32 %v1622, 2147483648
      %v2110 = vsel %vm2108, %v2109, %v2107
      %v2111 = vrsqrt.pop %v1623
      %v2112 = vmul.f32 %v1623, %v2111
      %vm2113 = vcmp.eq.f32.partialorder %v1623, inf
      %v2114 = vsel %vm2113, %v1623, %v2112
      %vm2115 = vcmp.eq.f32.partialorder %v1623, 0.0
      %v2116 = vand.u32 %v1623, 2147483648
      %v2117 = vsel %vm2115, %v2116, %v2114
      %v2118 = vrsqrt.pop %v1624
      %v2119 = vmul.f32 %v1624, %v2118
      %vm2120 = vcmp.eq.f32.partialorder %v1624, inf
      %v2121 = vsel %vm2120, %v1624, %v2119
      %vm2122 = vcmp.eq.f32.partialorder %v1624, 0.0
      %v2123 = vand.u32 %v1624, 2147483648
      %v2124 = vsel %vm2122, %v2123, %v2121
      %v2125 = vrsqrt.pop %v1625
      %v2126 = vmul.f32 %v1625, %v2125
      %vm2127 = vcmp.eq.f32.partialorder %v1625, inf
      %v2128 = vsel %vm2127, %v1625, %v2126
      %vm2129 = vcmp.eq.f32.partialorder %v1625, 0.0
      %v2130 = vand.u32 %v1625, 2147483648
      %v2131 = vsel %vm2129, %v2130, %v2128
      %v2132 = vrsqrt.pop %v1626
      %v2133 = vmul.f32 %v1626, %v2132
      %vm2134 = vcmp.eq.f32.partialorder %v1626, inf
      %v2135 = vsel %vm2134, %v1626, %v2133
      %vm2136 = vcmp.eq.f32.partialorder %v1626, 0.0
      %v2137 = vand.u32 %v1626, 2147483648
      %v2138 = vsel %vm2136, %v2137, %v2135
      %v2139 = vrsqrt.pop %v1627
      %v2140 = vmul.f32 %v1627, %v2139
      %vm2141 = vcmp.eq.f32.partialorder %v1627, inf
      %v2142 = vsel %vm2141, %v1627, %v2140
      %vm2143 = vcmp.eq.f32.partialorder %v1627, 0.0
      %v2144 = vand.u32 %v1627, 2147483648
      %v2145 = vsel %vm2143, %v2144, %v2142
      %v2146 = vrsqrt.pop %v1628
      %v2147 = vmul.f32 %v1628, %v2146
      %vm2148 = vcmp.eq.f32.partialorder %v1628, inf
      %v2149 = vsel %vm2148, %v1628, %v2147
      %vm2150 = vcmp.eq.f32.partialorder %v1628, 0.0
      %v2151 = vand.u32 %v1628, 2147483648
      %v2152 = vsel %vm2150, %v2151, %v2149
      %v2153 = vrsqrt.pop %v1629
      %v2154 = vmul.f32 %v1629, %v2153
      %vm2155 = vcmp.eq.f32.partialorder %v1629, inf
      %v2156 = vsel %vm2155, %v1629, %v2154
      %vm2157 = vcmp.eq.f32.partialorder %v1629, 0.0
      %v2158 = vand.u32 %v1629, 2147483648
      %v2159 = vsel %vm2157, %v2158, %v2156
      %v2160 = vrsqrt.pop %v1630
      %v2161 = vmul.f32 %v1630, %v2160
      %vm2162 = vcmp.eq.f32.partialorder %v1630, inf
      %v2163 = vsel %vm2162, %v1630, %v2161
      %vm2164 = vcmp.eq.f32.partialorder %v1630, 0.0
      %v2165 = vand.u32 %v1630, 2147483648
      %v2166 = vsel %vm2164, %v2165, %v2163
      %v2167 = vrsqrt.pop %v1631
      %v2168 = vmul.f32 %v1631, %v2167
      %vm2169 = vcmp.eq.f32.partialorder %v1631, inf
      %v2170 = vsel %vm2169, %v1631, %v2168
      %vm2171 = vcmp.eq.f32.partialorder %v1631, 0.0
      %v2172 = vand.u32 %v1631, 2147483648
      %v2173 = vsel %vm2171, %v2172, %v2170
      %v2174 = vrsqrt.pop %v1632
      %v2175 = vmul.f32 %v1632, %v2174
      %vm2176 = vcmp.eq.f32.partialorder %v1632, inf
      %v2177 = vsel %vm2176, %v1632, %v2175
      %vm2178 = vcmp.eq.f32.partialorder %v1632, 0.0
      %v2179 = vand.u32 %v1632, 2147483648
      %v2180 = vsel %vm2178, %v2179, %v2177
      %v2181 = vrsqrt.pop %v1633
      %v2182 = vmul.f32 %v1633, %v2181
      %vm2183 = vcmp.eq.f32.partialorder %v1633, inf
      %v2184 = vsel %vm2183, %v1633, %v2182
      %vm2185 = vcmp.eq.f32.partialorder %v1633, 0.0
      %v2186 = vand.u32 %v1633, 2147483648
      %v2187 = vsel %vm2185, %v2186, %v2184
      %v2188 = vrsqrt.pop %v1634
      %v2189 = vmul.f32 %v1634, %v2188
      %vm2190 = vcmp.eq.f32.partialorder %v1634, inf
      %v2191 = vsel %vm2190, %v1634, %v2189
      %vm2192 = vcmp.eq.f32.partialorder %v1634, 0.0
      %v2193 = vand.u32 %v1634, 2147483648
      %v2194 = vsel %vm2192, %v2193, %v2191
      %v2195 = vrsqrt.pop %v1635
      %v2196 = vmul.f32 %v1635, %v2195
      %vm2197 = vcmp.eq.f32.partialorder %v1635, inf
      %v2198 = vsel %vm2197, %v1635, %v2196
      %vm2199 = vcmp.eq.f32.partialorder %v1635, 0.0
      %v2200 = vand.u32 %v1635, 2147483648
      %v2201 = vsel %vm2199, %v2200, %v2198
      %v2202 = vrsqrt.pop %v1636
      %v2203 = vmul.f32 %v1636, %v2202
      %vm2204 = vcmp.eq.f32.partialorder %v1636, inf
      %v2205 = vsel %vm2204, %v1636, %v2203
      %vm2206 = vcmp.eq.f32.partialorder %v1636, 0.0
      %v2207 = vand.u32 %v1636, 2147483648
      %v2208 = vsel %vm2206, %v2207, %v2205
      %v2209 = vrsqrt.pop %v1637
      %v2210 = vmul.f32 %v1637, %v2209
      %vm2211 = vcmp.eq.f32.partialorder %v1637, inf
      %v2212 = vsel %vm2211, %v1637, %v2210
      %vm2213 = vcmp.eq.f32.partialorder %v1637, 0.0
      %v2214 = vand.u32 %v1637, 2147483648
      %v2215 = vsel %vm2213, %v2214, %v2212
      %v2216 = vrsqrt.pop %v1638
      %v2217 = vmul.f32 %v1638, %v2216
      %vm2218 = vcmp.eq.f32.partialorder %v1638, inf
      %v2219 = vsel %vm2218, %v1638, %v2217
      %vm2220 = vcmp.eq.f32.partialorder %v1638, 0.0
      %v2221 = vand.u32 %v1638, 2147483648
      %v2222 = vsel %vm2220, %v2221, %v2219
      %v2223 = vrsqrt.pop %v1639
      %v2224 = vmul.f32 %v1639, %v2223
      %vm2225 = vcmp.eq.f32.partialorder %v1639, inf
      %v2226 = vsel %vm2225, %v1639, %v2224
      %vm2227 = vcmp.eq.f32.partialorder %v1639, 0.0
      %v2228 = vand.u32 %v1639, 2147483648
      %v2229 = vsel %vm2227, %v2228, %v2226
      %v2230 = vrsqrt.pop %v1640
      %v2231 = vmul.f32 %v1640, %v2230
      %vm2232 = vcmp.eq.f32.partialorder %v1640, inf
      %v2233 = vsel %vm2232, %v1640, %v2231
      %vm2234 = vcmp.eq.f32.partialorder %v1640, 0.0
      %v2235 = vand.u32 %v1640, 2147483648
      %v2236 = vsel %vm2234, %v2235, %v2233
      %v2237 = vrsqrt.pop %v1641
      %v2238 = vmul.f32 %v1641, %v2237
      %vm2239 = vcmp.eq.f32.partialorder %v1641, inf
      %v2240 = vsel %vm2239, %v1641, %v2238
      %vm2241 = vcmp.eq.f32.partialorder %v1641, 0.0
      %v2242 = vand.u32 %v1641, 2147483648
      %v2243 = vsel %vm2241, %v2242, %v2240
      %v2244 = vrsqrt.pop %v1642
      %v2245 = vmul.f32 %v1642, %v2244
      %vm2246 = vcmp.eq.f32.partialorder %v1642, inf
      %v2247 = vsel %vm2246, %v1642, %v2245
      %vm2248 = vcmp.eq.f32.partialorder %v1642, 0.0
      %v2249 = vand.u32 %v1642, 2147483648
      %v2250 = vsel %vm2248, %v2249, %v2247
      %v2251 = vrsqrt.pop %v1643
      %v2252 = vmul.f32 %v1643, %v2251
      %vm2253 = vcmp.eq.f32.partialorder %v1643, inf
      %v2254 = vsel %vm2253, %v1643, %v2252
      %vm2255 = vcmp.eq.f32.partialorder %v1643, 0.0
      %v2256 = vand.u32 %v1643, 2147483648
      %v2257 = vsel %vm2255, %v2256, %v2254
      %v2258 = vrsqrt.pop %v1644
      %v2259 = vmul.f32 %v1644, %v2258
      %vm2260 = vcmp.eq.f32.partialorder %v1644, inf
      %v2261 = vsel %vm2260, %v1644, %v2259
      %vm2262 = vcmp.eq.f32.partialorder %v1644, 0.0
      %v2263 = vand.u32 %v1644, 2147483648
      %v2264 = vsel %vm2262, %v2263, %v2261
      %v2265 = vrsqrt.pop %v1645
      %v2266 = vmul.f32 %v1645, %v2265
      %vm2267 = vcmp.eq.f32.partialorder %v1645, inf
      %v2268 = vsel %vm2267, %v1645, %v2266
      %vm2269 = vcmp.eq.f32.partialorder %v1645, 0.0
      %v2270 = vand.u32 %v1645, 2147483648
      %v2271 = vsel %vm2269, %v2270, %v2268
      %v2272 = vrsqrt.pop %v1646
      %v2273 = vmul.f32 %v1646, %v2272
      %vm2274 = vcmp.eq.f32.partialorder %v1646, inf
      %v2275 = vsel %vm2274, %v1646, %v2273
      %vm2276 = vcmp.eq.f32.partialorder %v1646, 0.0
      %v2277 = vand.u32 %v1646, 2147483648
      %v2278 = vsel %vm2276, %v2277, %v2275
      %v2279 = vrsqrt.pop %v1647
      %v2280 = vmul.f32 %v1647, %v2279
      %vm2281 = vcmp.eq.f32.partialorder %v1647, inf
      %v2282 = vsel %vm2281, %v1647, %v2280
      %vm2283 = vcmp.eq.f32.partialorder %v1647, 0.0
      %v2284 = vand.u32 %v1647, 2147483648
      %v2285 = vsel %vm2283, %v2284, %v2282
      %v2286 = vrsqrt.pop %v1648
      %v2287 = vmul.f32 %v1648, %v2286
      %vm2288 = vcmp.eq.f32.partialorder %v1648, inf
      %v2289 = vsel %vm2288, %v1648, %v2287
      %vm2290 = vcmp.eq.f32.partialorder %v1648, 0.0
      %v2291 = vand.u32 %v1648, 2147483648
      %v2292 = vsel %vm2290, %v2291, %v2289
      %v2293 = vrsqrt.pop %v1649
      %v2294 = vmul.f32 %v1649, %v2293
      %vm2295 = vcmp.eq.f32.partialorder %v1649, inf
      %v2296 = vsel %vm2295, %v1649, %v2294
      %vm2297 = vcmp.eq.f32.partialorder %v1649, 0.0
      %v2298 = vand.u32 %v1649, 2147483648
      %v2299 = vsel %vm2297, %v2298, %v2296
      %v2300 = vrsqrt.pop %v1650
      %v2301 = vmul.f32 %v1650, %v2300
      %vm2302 = vcmp.eq.f32.partialorder %v1650, inf
      %v2303 = vsel %vm2302, %v1650, %v2301
      %vm2304 = vcmp.eq.f32.partialorder %v1650, 0.0
      %v2305 = vand.u32 %v1650, 2147483648
      %v2306 = vsel %vm2304, %v2305, %v2303
      %v2307 = vrsqrt.pop %v1651
      %v2308 = vmul.f32 %v1651, %v2307
      %vm2309 = vcmp.eq.f32.partialorder %v1651, inf
      %v2310 = vsel %vm2309, %v1651, %v2308
      %vm2311 = vcmp.eq.f32.partialorder %v1651, 0.0
      %v2312 = vand.u32 %v1651, 2147483648
      %v2313 = vsel %vm2311, %v2312, %v2310
      %v2314 = vrsqrt.pop %v1652
      %v2315 = vmul.f32 %v1652, %v2314
      %vm2316 = vcmp.eq.f32.partialorder %v1652, inf
      %v2317 = vsel %vm2316, %v1652, %v2315
      %vm2318 = vcmp.eq.f32.partialorder %v1652, 0.0
      %v2319 = vand.u32 %v1652, 2147483648
      %v2320 = vsel %vm2318, %v2319, %v2317
      %v2321 = vrsqrt.pop %v1653
      %v2322 = vmul.f32 %v1653, %v2321
      %vm2323 = vcmp.eq.f32.partialorder %v1653, inf
      %v2324 = vsel %vm2323, %v1653, %v2322
      %vm2325 = vcmp.eq.f32.partialorder %v1653, 0.0
      %v2326 = vand.u32 %v1653, 2147483648
      %v2327 = vsel %vm2325, %v2326, %v2324
      %v2328 = vrsqrt.pop %v1654
      %v2329 = vmul.f32 %v1654, %v2328
      %vm2330 = vcmp.eq.f32.partialorder %v1654, inf
      %v2331 = vsel %vm2330, %v1654, %v2329
      %vm2332 = vcmp.eq.f32.partialorder %v1654, 0.0
      %v2333 = vand.u32 %v1654, 2147483648
      %v2334 = vsel %vm2332, %v2333, %v2331
      %v2335 = vrsqrt.pop %v1655
      %v2336 = vmul.f32 %v1655, %v2335
      %vm2337 = vcmp.eq.f32.partialorder %v1655, inf
      %v2338 = vsel %vm2337, %v1655, %v2336
      %vm2339 = vcmp.eq.f32.partialorder %v1655, 0.0
      %v2340 = vand.u32 %v1655, 2147483648
      %v2341 = vsel %vm2339, %v2340, %v2338
      %v2342 = vrsqrt.pop %v1656
      %v2343 = vmul.f32 %v1656, %v2342
      %vm2344 = vcmp.eq.f32.partialorder %v1656, inf
      %v2345 = vsel %vm2344, %v1656, %v2343
      %vm2346 = vcmp.eq.f32.partialorder %v1656, 0.0
      %v2347 = vand.u32 %v1656, 2147483648
      %v2348 = vsel %vm2346, %v2347, %v2345
      %v2349 = vrsqrt.pop %v1657
      %v2350 = vmul.f32 %v1657, %v2349
      %vm2351 = vcmp.eq.f32.partialorder %v1657, inf
      %v2352 = vsel %vm2351, %v1657, %v2350
      %vm2353 = vcmp.eq.f32.partialorder %v1657, 0.0
      %v2354 = vand.u32 %v1657, 2147483648
      %v2355 = vsel %vm2353, %v2354, %v2352
      %v2356 = vrsqrt.pop %v1658
      %v2357 = vmul.f32 %v1658, %v2356
      %vm2358 = vcmp.eq.f32.partialorder %v1658, inf
      %v2359 = vsel %vm2358, %v1658, %v2357
      %vm2360 = vcmp.eq.f32.partialorder %v1658, 0.0
      %v2361 = vand.u32 %v1658, 2147483648
      %v2362 = vsel %vm2360, %v2361, %v2359
      %v2363 = vrsqrt.pop %v1659
      %v2364 = vmul.f32 %v1659, %v2363
      %vm2365 = vcmp.eq.f32.partialorder %v1659, inf
      %v2366 = vsel %vm2365, %v1659, %v2364
      %vm2367 = vcmp.eq.f32.partialorder %v1659, 0.0
      %v2368 = vand.u32 %v1659, 2147483648
      %v2369 = vsel %vm2367, %v2368, %v2366
      %v2370 = vrsqrt.pop %v1660
      %v2371 = vmul.f32 %v1660, %v2370
      %vm2372 = vcmp.eq.f32.partialorder %v1660, inf
      %v2373 = vsel %vm2372, %v1660, %v2371
      %vm2374 = vcmp.eq.f32.partialorder %v1660, 0.0
      %v2375 = vand.u32 %v1660, 2147483648
      %v2376 = vsel %vm2374, %v2375, %v2373
      %v2377 = vrsqrt.pop %v1661
      %v2378 = vmul.f32 %v1661, %v2377
      %vm2379 = vcmp.eq.f32.partialorder %v1661, inf
      %v2380 = vsel %vm2379, %v1661, %v2378
      %vm2381 = vcmp.eq.f32.partialorder %v1661, 0.0
      %v2382 = vand.u32 %v1661, 2147483648
      %v2383 = vsel %vm2381, %v2382, %v2380
      %v2384 = vrsqrt.pop %v1662
      %v2385 = vmul.f32 %v1662, %v2384
      %vm2386 = vcmp.eq.f32.partialorder %v1662, inf
      %v2387 = vsel %vm2386, %v1662, %v2385
      %vm2388 = vcmp.eq.f32.partialorder %v1662, 0.0
      %v2389 = vand.u32 %v1662, 2147483648
      %v2390 = vsel %vm2388, %v2389, %v2387
      %v2391 = vrsqrt.pop %v1663
      %v2392 = vmul.f32 %v1663, %v2391
      %vm2393 = vcmp.eq.f32.partialorder %v1663, inf
      %v2394 = vsel %vm2393, %v1663, %v2392
      %vm2395 = vcmp.eq.f32.partialorder %v1663, 0.0
      %v2396 = vand.u32 %v1663, 2147483648
      %v2397 = vsel %vm2395, %v2396, %v2394
      %v2398 = vrsqrt.pop %v1664
      %v2399 = vmul.f32 %v1664, %v2398
      %vm2400 = vcmp.eq.f32.partialorder %v1664, inf
      %v2401 = vsel %vm2400, %v1664, %v2399
      %vm2402 = vcmp.eq.f32.partialorder %v1664, 0.0
      %v2403 = vand.u32 %v1664, 2147483648
      %v2404 = vsel %vm2402, %v2403, %v2401
      %v2405 = vrsqrt.pop %v1665
      %v2406 = vmul.f32 %v1665, %v2405
      %vm2407 = vcmp.eq.f32.partialorder %v1665, inf
      %v2408 = vsel %vm2407, %v1665, %v2406
      %vm2409 = vcmp.eq.f32.partialorder %v1665, 0.0
      %v2410 = vand.u32 %v1665, 2147483648
      %v2411 = vsel %vm2409, %v2410, %v2408
      %v2412 = vrsqrt.pop %v1666
      %v2413 = vmul.f32 %v1666, %v2412
      %vm2414 = vcmp.eq.f32.partialorder %v1666, inf
      %v2415 = vsel %vm2414, %v1666, %v2413
      %vm2416 = vcmp.eq.f32.partialorder %v1666, 0.0
      %v2417 = vand.u32 %v1666, 2147483648
      %v2418 = vsel %vm2416, %v2417, %v2415
      %v2419 = vrsqrt.pop %v1667
      %v2420 = vmul.f32 %v1667, %v2419
      %vm2421 = vcmp.eq.f32.partialorder %v1667, inf
      %v2422 = vsel %vm2421, %v1667, %v2420
      %vm2423 = vcmp.eq.f32.partialorder %v1667, 0.0
      %v2424 = vand.u32 %v1667, 2147483648
      %v2425 = vsel %vm2423, %v2424, %v2422
      %v2426 = vrsqrt.pop %v1668
      %v2427 = vmul.f32 %v1668, %v2426
      %vm2428 = vcmp.eq.f32.partialorder %v1668, inf
      %v2429 = vsel %vm2428, %v1668, %v2427
      %vm2430 = vcmp.eq.f32.partialorder %v1668, 0.0
      %v2431 = vand.u32 %v1668, 2147483648
      %v2432 = vsel %vm2430, %v2431, %v2429
      %v2433 = vrsqrt.pop %v1669
      %v2434 = vmul.f32 %v1669, %v2433
      %vm2435 = vcmp.eq.f32.partialorder %v1669, inf
      %v2436 = vsel %vm2435, %v1669, %v2434
      %vm2437 = vcmp.eq.f32.partialorder %v1669, 0.0
      %v2438 = vand.u32 %v1669, 2147483648
      %v2439 = vsel %vm2437, %v2438, %v2436
      %v2440 = vrsqrt.pop %v1670
      %v2441 = vmul.f32 %v1670, %v2440
      %vm2442 = vcmp.eq.f32.partialorder %v1670, inf
      %v2443 = vsel %vm2442, %v1670, %v2441
      %vm2444 = vcmp.eq.f32.partialorder %v1670, 0.0
      %v2445 = vand.u32 %v1670, 2147483648
      %v2446 = vsel %vm2444, %v2445, %v2443
      %v2447 = vrsqrt.pop %v1671
      %v2448 = vmul.f32 %v1671, %v2447
      %vm2449 = vcmp.eq.f32.partialorder %v1671, inf
      %v2450 = vsel %vm2449, %v1671, %v2448
      %vm2451 = vcmp.eq.f32.partialorder %v1671, 0.0
      %v2452 = vand.u32 %v1671, 2147483648
      %v2453 = vsel %vm2451, %v2452, %v2450
      %v2454 = vrsqrt.pop %v1672
      %v2455 = vmul.f32 %v1672, %v2454
      %vm2456 = vcmp.eq.f32.partialorder %v1672, inf
      %v2457 = vsel %vm2456, %v1672, %v2455
      %vm2458 = vcmp.eq.f32.partialorder %v1672, 0.0
      %v2459 = vand.u32 %v1672, 2147483648
      %v2460 = vsel %vm2458, %v2459, %v2457
      %v2461 = vrsqrt.pop %v1673
      %v2462 = vmul.f32 %v1673, %v2461
      %vm2463 = vcmp.eq.f32.partialorder %v1673, inf
      %v2464 = vsel %vm2463, %v1673, %v2462
      %vm2465 = vcmp.eq.f32.partialorder %v1673, 0.0
      %v2466 = vand.u32 %v1673, 2147483648
      %v2467 = vsel %vm2465, %v2466, %v2464
      %v2468 = vrsqrt.pop %v1674
      %v2469 = vmul.f32 %v1674, %v2468
      %vm2470 = vcmp.eq.f32.partialorder %v1674, inf
      %v2471 = vsel %vm2470, %v1674, %v2469
      %vm2472 = vcmp.eq.f32.partialorder %v1674, 0.0
      %v2473 = vand.u32 %v1674, 2147483648
      %v2474 = vsel %vm2472, %v2473, %v2471
      %v2475 = vrsqrt.pop %v1675
      %v2476 = vmul.f32 %v1675, %v2475
      %vm2477 = vcmp.eq.f32.partialorder %v1675, inf
      %v2478 = vsel %vm2477, %v1675, %v2476
      %vm2479 = vcmp.eq.f32.partialorder %v1675, 0.0
      %v2480 = vand.u32 %v1675, 2147483648
      %v2481 = vsel %vm2479, %v2480, %v2478
      %v2482 = vrsqrt.pop %v1676
      %v2483 = vmul.f32 %v1676, %v2482
      %vm2484 = vcmp.eq.f32.partialorder %v1676, inf
      %v2485 = vsel %vm2484, %v1676, %v2483
      %vm2486 = vcmp.eq.f32.partialorder %v1676, 0.0
      %v2487 = vand.u32 %v1676, 2147483648
      %v2488 = vsel %vm2486, %v2487, %v2485
      %v2489 = vrsqrt.pop %v1677
      %v2490 = vmul.f32 %v1677, %v2489
      %vm2491 = vcmp.eq.f32.partialorder %v1677, inf
      %v2492 = vsel %vm2491, %v1677, %v2490
      %vm2493 = vcmp.eq.f32.partialorder %v1677, 0.0
      %v2494 = vand.u32 %v1677, 2147483648
      %v2495 = vsel %vm2493, %v2494, %v2492
      %v2496 = vrsqrt.pop %v1678
      %v2497 = vmul.f32 %v1678, %v2496
      %vm2498 = vcmp.eq.f32.partialorder %v1678, inf
      %v2499 = vsel %vm2498, %v1678, %v2497
      %vm2500 = vcmp.eq.f32.partialorder %v1678, 0.0
      %v2501 = vand.u32 %v1678, 2147483648
      %v2502 = vsel %vm2500, %v2501, %v2499
      %v2503 = vrsqrt.pop %v1679
      %v2504 = vmul.f32 %v1679, %v2503
      %vm2505 = vcmp.eq.f32.partialorder %v1679, inf
      %v2506 = vsel %vm2505, %v1679, %v2504
      %vm2507 = vcmp.eq.f32.partialorder %v1679, 0.0
      %v2508 = vand.u32 %v1679, 2147483648
      %v2509 = vsel %vm2507, %v2508, %v2506
      %v2510 = vrsqrt.pop %v1680
      %v2511 = vmul.f32 %v1680, %v2510
      %vm2512 = vcmp.eq.f32.partialorder %v1680, inf
      %v2513 = vsel %vm2512, %v1680, %v2511
      %vm2514 = vcmp.eq.f32.partialorder %v1680, 0.0
      %v2515 = vand.u32 %v1680, 2147483648
      %v2516 = vsel %vm2514, %v2515, %v2513
      %v2517 = vrsqrt.pop %v1681
      %v2518 = vmul.f32 %v1681, %v2517
      %vm2519 = vcmp.eq.f32.partialorder %v1681, inf
      %v2520 = vsel %vm2519, %v1681, %v2518
      %vm2521 = vcmp.eq.f32.partialorder %v1681, 0.0
      %v2522 = vand.u32 %v1681, 2147483648
      %v2523 = vsel %vm2521, %v2522, %v2520
      %v2524 = vrsqrt.pop %v1682
      %v2525 = vmul.f32 %v1682, %v2524
      %vm2526 = vcmp.eq.f32.partialorder %v1682, inf
      %v2527 = vsel %vm2526, %v1682, %v2525
      %vm2528 = vcmp.eq.f32.partialorder %v1682, 0.0
      %v2529 = vand.u32 %v1682, 2147483648
      %v2530 = vsel %vm2528, %v2529, %v2527
      %v2531 = vrsqrt.pop %v1683
      %v2532 = vmul.f32 %v1683, %v2531
      %vm2533 = vcmp.eq.f32.partialorder %v1683, inf
      %v2534 = vsel %vm2533, %v1683, %v2532
      %vm2535 = vcmp.eq.f32.partialorder %v1683, 0.0
      %v2536 = vand.u32 %v1683, 2147483648
      %v2537 = vsel %vm2535, %v2536, %v2534
      %v2538 = vrsqrt.pop %v1684
      %v2539 = vmul.f32 %v1684, %v2538
      %vm2540 = vcmp.eq.f32.partialorder %v1684, inf
      %v2541 = vsel %vm2540, %v1684, %v2539
      %vm2542 = vcmp.eq.f32.partialorder %v1684, 0.0
      %v2543 = vand.u32 %v1684, 2147483648
      %v2544 = vsel %vm2542, %v2543, %v2541
      %v2545 = vrsqrt.pop %v1685
      %v2546 = vmul.f32 %v1685, %v2545
      %vm2547 = vcmp.eq.f32.partialorder %v1685, inf
      %v2548 = vsel %vm2547, %v1685, %v2546
      %vm2549 = vcmp.eq.f32.partialorder %v1685, 0.0
      %v2550 = vand.u32 %v1685, 2147483648
      %v2551 = vsel %vm2549, %v2550, %v2548
      %v2552 = vrsqrt.pop %v1686
      %v2553 = vmul.f32 %v1686, %v2552
      %vm2554 = vcmp.eq.f32.partialorder %v1686, inf
      %v2555 = vsel %vm2554, %v1686, %v2553
      %vm2556 = vcmp.eq.f32.partialorder %v1686, 0.0
      %v2557 = vand.u32 %v1686, 2147483648
      %v2558 = vsel %vm2556, %v2557, %v2555
      %v2559 = vrsqrt.pop %v1687
      %v2560 = vmul.f32 %v1687, %v2559
      %vm2561 = vcmp.eq.f32.partialorder %v1687, inf
      %v2562 = vsel %vm2561, %v1687, %v2560
      %vm2563 = vcmp.eq.f32.partialorder %v1687, 0.0
      %v2564 = vand.u32 %v1687, 2147483648
      %v2565 = vsel %vm2563, %v2564, %v2562
      %v2566 = vrsqrt.pop %v1688
      %v2567 = vmul.f32 %v1688, %v2566
      %vm2568 = vcmp.eq.f32.partialorder %v1688, inf
      %v2569 = vsel %vm2568, %v1688, %v2567
      %vm2570 = vcmp.eq.f32.partialorder %v1688, 0.0
      %v2571 = vand.u32 %v1688, 2147483648
      %v2572 = vsel %vm2570, %v2571, %v2569
      %v2573 = vrsqrt.pop %v1689
      %v2574 = vmul.f32 %v1689, %v2573
      %vm2575 = vcmp.eq.f32.partialorder %v1689, inf
      %v2576 = vsel %vm2575, %v1689, %v2574
      %vm2577 = vcmp.eq.f32.partialorder %v1689, 0.0
      %v2578 = vand.u32 %v1689, 2147483648
      %v2579 = vsel %vm2577, %v2578, %v2576
      %v2580 = vrsqrt.pop %v1690
      %v2581 = vmul.f32 %v1690, %v2580
      %vm2582 = vcmp.eq.f32.partialorder %v1690, inf
      %v2583 = vsel %vm2582, %v1690, %v2581
      %vm2584 = vcmp.eq.f32.partialorder %v1690, 0.0
      %v2585 = vand.u32 %v1690, 2147483648
      %v2586 = vsel %vm2584, %v2585, %v2583
      %vm2587 = vcmask 7168
      %2588 = vst.msk [vmem:[%s145] sm:$0xff] %vm2587, %v1697
      %2589 = vst.msk [vmem:[%s145 + $0x8] sm:$0xff] %vm2587, %v1704
      %2590 = vst.msk [vmem:[%s145 + $0x10] sm:$0xff] %vm2587, %v1711
      %2591 = vst.msk [vmem:[%s145 + $0x18] sm:$0xff] %vm2587, %v1718
      %2592 = vst.msk [vmem:[%s145 + $0x20] sm:$0xff] %vm2587, %v1725
      %2593 = vst.msk [vmem:[%s145 + $0x28] sm:$0xff] %vm2587, %v1732
      %2594 = vst.msk [vmem:[%s145 + $0x30] sm:$0xff] %vm2587, %v1739
      %2595 = vst.msk [vmem:[%s145 + $0x38] sm:$0xff] %vm2587, %v1746
      %2596 = vst.msk [vmem:[%s145 + $0x40] sm:$0xff] %vm2587, %v1753
      %2597 = vst.msk [vmem:[%s145 + $0x48] sm:$0xff] %vm2587, %v1760
      %2598 = vst.msk [vmem:[%s145 + $0x50] sm:$0xff] %vm2587, %v1767
      %2599 = vst.msk [vmem:[%s145 + $0x58] sm:$0xff] %vm2587, %v1774
      %2600 = vst.msk [vmem:[%s145 + $0x60] sm:$0xff] %vm2587, %v1781
      %2601 = vst.msk [vmem:[%s145 + $0x68] sm:$0xff] %vm2587, %v1788
      %2602 = vst.msk [vmem:[%s145 + $0x70] sm:$0xff] %vm2587, %v1795
      %2603 = vst.msk [vmem:[%s145 + $0x78] sm:$0xff] %vm2587, %v1802
      %2604 = vst.msk [vmem:[%s145 + $0x80] sm:$0xff] %vm2587, %v1809
      %2605 = vst.msk [vmem:[%s145 + $0x88] sm:$0xff] %vm2587, %v1816
      %2606 = vst.msk [vmem:[%s145 + $0x90] sm:$0xff] %vm2587, %v1823
      %2607 = vst.msk [vmem:[%s145 + $0x98] sm:$0xff] %vm2587, %v1830
      %2608 = vst.msk [vmem:[%s145 + $0xa0] sm:$0xff] %vm2587, %v1837
      %2609 = vst.msk [vmem:[%s145 + $0xa8] sm:$0xff] %vm2587, %v1844
      %2610 = vst.msk [vmem:[%s145 + $0xb0] sm:$0xff] %vm2587, %v1851
      %2611 = vst.msk [vmem:[%s145 + $0xb8] sm:$0xff] %vm2587, %v1858
      %2612 = vst.msk [vmem:[%s145 + $0xc0] sm:$0xff] %vm2587, %v1865
      %2613 = vst.msk [vmem:[%s145 + $0xc8] sm:$0xff] %vm2587, %v1872
      %2614 = vst.msk [vmem:[%s145 + $0xd0] sm:$0xff] %vm2587, %v1879
      %2615 = vst.msk [vmem:[%s145 + $0xd8] sm:$0xff] %vm2587, %v1886
      %2616 = vst.msk [vmem:[%s145 + $0xe0] sm:$0xff] %vm2587, %v1893
      %2617 = vst.msk [vmem:[%s145 + $0xe8] sm:$0xff] %vm2587, %v1900
      %2618 = vst.msk [vmem:[%s145 + $0xf0] sm:$0xff] %vm2587, %v1907
      %2619 = vst.msk [vmem:[%s145 + $0xf8] sm:$0xff] %vm2587, %v1914
      %2620 = vst.msk [vmem:[%s145 + $0x100] sm:$0xff] %vm2587, %v1921
      %2621 = vst.msk [vmem:[%s145 + $0x108] sm:$0xff] %vm2587, %v1928
      %2622 = vst.msk [vmem:[%s145 + $0x110] sm:$0xff] %vm2587, %v1935
      %2623 = vst.msk [vmem:[%s145 + $0x118] sm:$0xff] %vm2587, %v1942
      %2624 = vst.msk [vmem:[%s145 + $0x120] sm:$0xff] %vm2587, %v1949
      %2625 = vst.msk [vmem:[%s145 + $0x128] sm:$0xff] %vm2587, %v1956
      %2626 = vst.msk [vmem:[%s145 + $0x130] sm:$0xff] %vm2587, %v1963
      %2627 = vst.msk [vmem:[%s145 + $0x138] sm:$0xff] %vm2587, %v1970
      %2628 = vst.msk [vmem:[%s145 + $0x140] sm:$0xff] %vm2587, %v1977
      %2629 = vst.msk [vmem:[%s145 + $0x148] sm:$0xff] %vm2587, %v1984
      %2630 = vst.msk [vmem:[%s145 + $0x150] sm:$0xff] %vm2587, %v1991
      %2631 = vst.msk [vmem:[%s145 + $0x158] sm:$0xff] %vm2587, %v1998
      %2632 = vst.msk [vmem:[%s145 + $0x160] sm:$0xff] %vm2587, %v2005
      %2633 = vst.msk [vmem:[%s145 + $0x168] sm:$0xff] %vm2587, %v2012
      %2634 = vst.msk [vmem:[%s145 + $0x170] sm:$0xff] %vm2587, %v2019
      %2635 = vst.msk [vmem:[%s145 + $0x178] sm:$0xff] %vm2587, %v2026
      %2636 = vst.msk [vmem:[%s145 + $0x180] sm:$0xff] %vm2587, %v2033
      %2637 = vst.msk [vmem:[%s145 + $0x188] sm:$0xff] %vm2587, %v2040
      %2638 = vst.msk [vmem:[%s145 + $0x190] sm:$0xff] %vm2587, %v2047
      %2639 = vst.msk [vmem:[%s145 + $0x198] sm:$0xff] %vm2587, %v2054
      %2640 = vst.msk [vmem:[%s145 + $0x1a0] sm:$0xff] %vm2587, %v2061
      %2641 = vst.msk [vmem:[%s145 + $0x1a8] sm:$0xff] %vm2587, %v2068
      %2642 = vst.msk [vmem:[%s145 + $0x1b0] sm:$0xff] %vm2587, %v2075
      %2643 = vst.msk [vmem:[%s145 + $0x1b8] sm:$0xff] %vm2587, %v2082
      %2644 = vst.msk [vmem:[%s145 + $0x1c0] sm:$0xff] %vm2587, %v2089
      %2645 = vst.msk [vmem:[%s145 + $0x1c8] sm:$0xff] %vm2587, %v2096
      %2646 = vst.msk [vmem:[%s145 + $0x1d0] sm:$0xff] %vm2587, %v2103
      %2647 = vst.msk [vmem:[%s145 + $0x1d8] sm:$0xff] %vm2587, %v2110
      %2648 = vst.msk [vmem:[%s145 + $0x1e0] sm:$0xff] %vm2587, %v2117
      %2649 = vst.msk [vmem:[%s145 + $0x1e8] sm:$0xff] %vm2587, %v2124
      %2650 = vst.msk [vmem:[%s145 + $0x1f0] sm:$0xff] %vm2587, %v2131
      %2651 = vst.msk [vmem:[%s145 + $0x1f8] sm:$0xff] %vm2587, %v2138
      %2652 = vst.msk [vmem:[%s145 + $0x200] sm:$0xff] %vm2587, %v2145
      %2653 = vst.msk [vmem:[%s145 + $0x208] sm:$0xff] %vm2587, %v2152
      %2654 = vst.msk [vmem:[%s145 + $0x210] sm:$0xff] %vm2587, %v2159
      %2655 = vst.msk [vmem:[%s145 + $0x218] sm:$0xff] %vm2587, %v2166
      %2656 = vst.msk [vmem:[%s145 + $0x220] sm:$0xff] %vm2587, %v2173
      %2657 = vst.msk [vmem:[%s145 + $0x228] sm:$0xff] %vm2587, %v2180
      %2658 = vst.msk [vmem:[%s145 + $0x230] sm:$0xff] %vm2587, %v2187
      %2659 = vst.msk [vmem:[%s145 + $0x238] sm:$0xff] %vm2587, %v2194
      %2660 = vst.msk [vmem:[%s145 + $0x240] sm:$0xff] %vm2587, %v2201
      %2661 = vst.msk [vmem:[%s145 + $0x248] sm:$0xff] %vm2587, %v2208
      %2662 = vst.msk [vmem:[%s145 + $0x250] sm:$0xff] %vm2587, %v2215
      %2663 = vst.msk [vmem:[%s145 + $0x258] sm:$0xff] %vm2587, %v2222
      %2664 = vst.msk [vmem:[%s145 + $0x260] sm:$0xff] %vm2587, %v2229
      %2665 = vst.msk [vmem:[%s145 + $0x268] sm:$0xff] %vm2587, %v2236
      %2666 = vst.msk [vmem:[%s145 + $0x270] sm:$0xff] %vm2587, %v2243
      %2667 = vst.msk [vmem:[%s145 + $0x278] sm:$0xff] %vm2587, %v2250
      %2668 = vst.msk [vmem:[%s145 + $0x280] sm:$0xff] %vm2587, %v2257
      %2669 = vst.msk [vmem:[%s145 + $0x288] sm:$0xff] %vm2587, %v2264
      %2670 = vst.msk [vmem:[%s145 + $0x290] sm:$0xff] %vm2587, %v2271
      %2671 = vst.msk [vmem:[%s145 + $0x298] sm:$0xff] %vm2587, %v2278
      %2672 = vst.msk [vmem:[%s145 + $0x2a0] sm:$0xff] %vm2587, %v2285
      %2673 = vst.msk [vmem:[%s145 + $0x2a8] sm:$0xff] %vm2587, %v2292
      %2674 = vst.msk [vmem:[%s145 + $0x2b0] sm:$0xff] %vm2587, %v2299
      %2675 = vst.msk [vmem:[%s145 + $0x2b8] sm:$0xff] %vm2587, %v2306
      %2676 = vst.msk [vmem:[%s145 + $0x2c0] sm:$0xff] %vm2587, %v2313
      %2677 = vst.msk [vmem:[%s145 + $0x2c8] sm:$0xff] %vm2587, %v2320
      %2678 = vst.msk [vmem:[%s145 + $0x2d0] sm:$0xff] %vm2587, %v2327
      %2679 = vst.msk [vmem:[%s145 + $0x2d8] sm:$0xff] %vm2587, %v2334
      %2680 = vst.msk [vmem:[%s145 + $0x2e0] sm:$0xff] %vm2587, %v2341
      %2681 = vst.msk [vmem:[%s145 + $0x2e8] sm:$0xff] %vm2587, %v2348
      %2682 = vst.msk [vmem:[%s145 + $0x2f0] sm:$0xff] %vm2587, %v2355
      %2683 = vst.msk [vmem:[%s145 + $0x2f8] sm:$0xff] %vm2587, %v2362
      %2684 = vst.msk [vmem:[%s145 + $0x300] sm:$0xff] %vm2587, %v2369
      %2685 = vst.msk [vmem:[%s145 + $0x308] sm:$0xff] %vm2587, %v2376
      %2686 = vst.msk [vmem:[%s145 + $0x310] sm:$0xff] %vm2587, %v2383
      %2687 = vst.msk [vmem:[%s145 + $0x318] sm:$0xff] %vm2587, %v2390
      %2688 = vst.msk [vmem:[%s145 + $0x320] sm:$0xff] %vm2587, %v2397
      %2689 = vst.msk [vmem:[%s145 + $0x328] sm:$0xff] %vm2587, %v2404
      %2690 = vst.msk [vmem:[%s145 + $0x330] sm:$0xff] %vm2587, %v2411
      %2691 = vst.msk [vmem:[%s145 + $0x338] sm:$0xff] %vm2587, %v2418
      %2692 = vst.msk [vmem:[%s145 + $0x340] sm:$0xff] %vm2587, %v2425
      %2693 = vst.msk [vmem:[%s145 + $0x348] sm:$0xff] %vm2587, %v2432
      %2694 = vst.msk [vmem:[%s145 + $0x350] sm:$0xff] %vm2587, %v2439
      %2695 = vst.msk [vmem:[%s145 + $0x358] sm:$0xff] %vm2587, %v2446
      %2696 = vst.msk [vmem:[%s145 + $0x360] sm:$0xff] %vm2587, %v2453
      %2697 = vst.msk [vmem:[%s145 + $0x368] sm:$0xff] %vm2587, %v2460
      %2698 = vst.msk [vmem:[%s145 + $0x370] sm:$0xff] %vm2587, %v2467
      %2699 = vst.msk [vmem:[%s145 + $0x378] sm:$0xff] %vm2587, %v2474
      %2700 = vst.msk [vmem:[%s145 + $0x380] sm:$0xff] %vm2587, %v2481
      %2701 = vst.msk [vmem:[%s145 + $0x388] sm:$0xff] %vm2587, %v2488
      %2702 = vst.msk [vmem:[%s145 + $0x390] sm:$0xff] %vm2587, %v2495
      %2703 = vst.msk [vmem:[%s145 + $0x398] sm:$0xff] %vm2587, %v2502
      %2704 = vst.msk [vmem:[%s145 + $0x3a0] sm:$0xff] %vm2587, %v2509
      %2705 = vst.msk [vmem:[%s145 + $0x3a8] sm:$0xff] %vm2587, %v2516
      %2706 = vst.msk [vmem:[%s145 + $0x3b0] sm:$0xff] %vm2587, %v2523
      %2707 = vst.msk [vmem:[%s145 + $0x3b8] sm:$0xff] %vm2587, %v2530
      %2708 = vst.msk [vmem:[%s145 + $0x3c0] sm:$0xff] %vm2587, %v2537
      %2709 = vst.msk [vmem:[%s145 + $0x3c8] sm:$0xff] %vm2587, %v2544
      %2710 = vst.msk [vmem:[%s145 + $0x3d0] sm:$0xff] %vm2587, %v2551
      %2711 = vst.msk [vmem:[%s145 + $0x3d8] sm:$0xff] %vm2587, %v2558
      %2712 = vst.msk [vmem:[%s145 + $0x3e0] sm:$0xff] %vm2587, %v2565
      %2713 = vst.msk [vmem:[%s145 + $0x3e8] sm:$0xff] %vm2587, %v2572
      %2714 = vst.msk [vmem:[%s145 + $0x3f0] sm:$0xff] %vm2587, %v2579
      %2715 = vst.msk [vmem:[%s145 + $0x3f8] sm:$0xff] %vm2587, %v2586
      %s2716 = smul.u32 128, %s13
      %p2717 = scmp.lt.s32.totalorder %s2716, 383
      %s2718 = scalar_select %p2717, %s2716, 383
      %s2719 = smul.addr %s2718, 8
      %s2720 = scalar_lea.vmem %s2, %s2719
      // Predicated region
      $region29: #{tpu_custom_call.1} parent=27 // pred_check
        %p2721 = pneg %p78
      $region30: #{tpu_custom_call.1} parent=27 // pred_check_branch
        %2723 = sbr.rel (%p2721) target = $region32
      $region31: #{tpu_custom_call.1} parent=27 // pred_region
        %s2724 = smul.u32 128, %s13
      $region32: #{tpu_custom_call.1} parent=27 // pred_fallthru
        _
    $region28: #{tpu_custom_call.1} parent=5 // pred_fallthru
      _
    %p2725 = scmp.le.s32.totalorder 2, %s8
    // Predicated region
    $region33: #{tpu_custom_call.1} parent=5 // pred_check
      %p2726 = pneg %p2725
    $region34: #{tpu_custom_call.1} parent=5 // pred_check_branch
      %2728 = sbr.rel (%p2726) target = $region36
    $region35: #{tpu_custom_call.1} parent=5 // pred_region
      %s2729 = ssub.s32 %s8, 2
      // Predicated region
      $region37: #{tpu_custom_call.1} parent=35 // pred_check
        %p2730 = pneg %p84
      $region38: #{tpu_custom_call.1} parent=35 // pred_check_branch
        %2732 = sbr.rel (%p2730) target = $region40
      $region39: #{tpu_custom_call.1} parent=35 // pred_region
        %s2733 = smul.u32 128, %s14
        %p2734 = scmp.lt.s32.totalorder %s2733, 383
        %s2735 = scalar_select %p2734, %s2733, 383
        %s2736 = smul.addr %s2735, 8
        %s2737 = scalar_lea.vmem %s2, %s2736
      $region40: #{tpu_custom_call.1} parent=35 // pred_fallthru
        _
    $region36: #{tpu_custom_call.1} parent=5 // pred_fallthru
      _
  $region6: #{tpu_custom_call.1} parent=0 // loop_footer
    %s12 = sadd.s32 1, %s8
  $region7: #{tpu_custom_call.1} parent=0 // loop_footer_branch
    %7 = sbr.rel target = $region3
  $region8: #{tpu_custom_call.1} parent=0 // loop_exit
    _

</llo_original>
